<compile_context>
chip_gen: v7x
topology: tpu7x:2x2x1
jax: 0.10.0
libtpu: 0.0.40
codegen_flags: <defaults>
</compile_context>

<pallas_src>
import functools
import math

import jax
import jax.numpy as jnp
from jax import lax
from jax.experimental import pallas as pl
from jax.experimental.pallas import tpu as pltpu


def _my_bert_attention_kernel(num_heads, head_dim, eps, has_source, *refs):
    if has_source:
        (hid_ref, mask_ref, src_ref, wf_ref, bf_ref, wk2_ref, bk2_ref,
         wo_ref, bo_ref, lng_ref, lnb_ref, out_ref) = refs
    else:
        (hid_ref, mask_ref, wf_ref, bf_ref,
         wo_ref, bo_ref, lng_ref, lnb_ref, out_ref) = refs

    H = num_heads * head_dim
    x = hid_ref[0]                                  # [S, H]
    S = x.shape[0]
    mask = mask_ref[0].astype(jnp.float32)          # [1, S] additive mask
    cdt = wf_ref.dtype                              # MXU compute dtype (f32 or bf16)
    xc = x.astype(cdt)

    # ---- fused Q|K|V(|Qsrc) projection: one wide MXU matmul, f32 accumulate ----
    qkv = jnp.dot(xc, wf_ref[...], preferred_element_type=jnp.float32)
    qkv = qkv + bf_ref[...].astype(jnp.float32)     # [S, 3H] or [S, 4H]

    if has_source:
        srcc = src_ref[0].astype(cdt)
        k2 = jnp.dot(srcc, wk2_ref[...], preferred_element_type=jnp.float32)
        k2 = k2 + bk2_ref[...].astype(jnp.float32)  # [S, H]

    scale = 1.0 / math.sqrt(head_dim)
    wo = wo_ref[...]                                # [NH, hd, H] (leading-dim per head)
    dn_t = (((1,), (1,)), ((), ()))                 # contract last dims: A @ B.T, no .T op

    acc = jnp.zeros((S, H), jnp.float32)            # output-dense accumulator
    for h in range(num_heads):                      # static unroll over heads
        lo = h * head_dim
        hi = lo + head_dim
        q_h = qkv[:, lo:hi].astype(cdt)             # [S, hd]
        k_h = qkv[:, H + lo:H + hi].astype(cdt)
        v_h = qkv[:, 2 * H + lo:2 * H + hi].astype(cdt)

        s = lax.dot_general(q_h, k_h, dn_t, preferred_element_type=jnp.float32)
        if has_source:
            q2_h = qkv[:, 3 * H + lo:3 * H + hi].astype(cdt)
            k2_h = k2[:, lo:hi].astype(cdt)
            s = s + lax.dot_general(q2_h, k2_h, dn_t,
                                    preferred_element_type=jnp.float32)
        s = s * scale + mask                        # [1,S] broadcasts over query rows
        s = s - jnp.max(s, axis=-1, keepdims=True)  # stable softmax (f32 stats)
        p = jnp.exp(s)
        p = p * pl.reciprocal(jnp.sum(p, axis=-1, keepdims=True), approx=True)
        # TODO(synk): attention_probs dropout is identity in eval mode.
        ctx = jnp.dot(p.astype(cdt), v_h, preferred_element_type=jnp.float32)  # [S, hd]
        # Fold the head-merge + output dense together: acc += ctx_h @ W_out[h]
        acc = acc + jnp.dot(ctx.astype(cdt), wo[h].astype(cdt),
                            preferred_element_type=jnp.float32)

    a = acc + bo_ref[...].astype(jnp.float32)       # BertSelfOutput.dense
    # TODO(synk): hidden dropout is identity in eval mode.
    y = a + x.astype(jnp.float32)                   # residual
    mean = jnp.mean(y, axis=-1, keepdims=True)
    var = jnp.mean((y - mean) ** 2, axis=-1, keepdims=True)
    y = (y - mean) * lax.rsqrt(var + eps)
    y = y * lng_ref[...].astype(jnp.float32) + lnb_ref[...].astype(jnp.float32)
    out_ref[0] = y.astype(out_ref.dtype)


def my_bert_attention(hidden, attn_mask, params, *, num_heads,
                      source_embedding=None, eps=1e-12):
    """hidden: [B,S,H]; attn_mask: [B,1,S] additive; source_embedding: [B,S,H] or None."""
    B, S, H = hidden.shape
    head_dim = H // num_heads
    has_source = source_embedding is not None

    # Fuse Wq|Wk|Wv (and the SourceAttendsSubthread query) into one [H, 3H/4H] weight.
    w_list = [params["wq"], params["wk"], params["wv"]]
    b_list = [params["bq"], params["bk"], params["bv"]]
    if has_source:
        w_list.append(params["wq_src"])
        b_list.append(params["bq_src"])
    w_fused = jnp.concatenate(w_list, axis=1)
    b_fused = jnp.concatenate(b_list, axis=1)

    # Output dense weight split per head along the LEADING axis: [NH, hd, H].
    w_out_h = params["w_attn_out"].reshape(num_heads, head_dim, H)

    data_spec = lambda: pl.BlockSpec((1, S, H), lambda b: (b, 0, 0))
    in_specs = [data_spec(), pl.BlockSpec((1, 1, S), lambda b: (b, 0, 0))]
    operands = [hidden, attn_mask]
    if has_source:
        in_specs.append(data_spec())
        operands.append(source_embedding)

    def const_spec(arr):
        n = arr.ndim
        return pl.BlockSpec(arr.shape, lambda b, n=n: (0,) * n)

    consts = [w_fused, b_fused]
    if has_source:
        consts += [params["wk_src"], params["bk_src"]]
    consts += [w_out_h, params["b_attn_out"], params["ln_g"], params["ln_b"]]
    in_specs += [const_spec(c) for c in consts]
    operands += consts

    # Advisory cost estimate so XLA can schedule surrounding ops around the call.
    proj_cols = int(w_fused.shape[1])
    flops_per_b = (
        2 * S * H * proj_cols                                   # fused projection
        + (2 * S * H * H if has_source else 0)                  # source key projection
        + num_heads * 2 * S * S * head_dim * (3 if has_source else 2)  # scores(+src), ctx
        + 2 * S * H * H                                          # output dense
    )
    cost = pl.CostEstimate(
        flops=B * flops_per_b,
        transcendentals=B * num_heads * S * S,
        bytes_accessed=int(sum(int(op.size) * op.dtype.itemsize for op in operands))
        + B * S * H * hidden.dtype.itemsize,
    )

    kernel = functools.partial(_my_bert_attention_kernel,
                               num_heads, head_dim, eps, has_source)
    return pl.pallas_call(
        kernel,
        out_shape=jax.ShapeDtypeStruct((B, S, H), hidden.dtype),
        grid_spec=pltpu.PrefetchScalarGridSpec(
            num_scalar_prefetch=0,
            grid=(B,),
            in_specs=in_specs,
            out_specs=pl.BlockSpec((1, S, H), lambda b: (b, 0, 0)),
        ),
        compiler_params=pltpu.CompilerParams(
            dimension_semantics=("parallel",),          # megacore over batch
            vmem_limit_bytes=48 * 1024 * 1024,          # cover BERT-base working set
        ),
        cost_estimate=cost,
    )(*operands)


def _reference(hidden, attn_mask, params, *, num_heads, source_embedding=None, eps=1e-12):
    """Pure-JAX reference matching the PyTorch module."""
    B, S, H = hidden.shape
    hd = H // num_heads

    def proj(x, w, b):
        return x @ w + b

    def split(t):  # [B,S,H] -> [B,NH,S,hd]
        return t.reshape(B, S, num_heads, hd).transpose(0, 2, 1, 3)

    q = split(proj(hidden, params["wq"], params["bq"]))
    k = split(proj(hidden, params["wk"], params["bk"]))
    v = split(proj(hidden, params["wv"], params["bv"]))
    scores = jnp.einsum("bnsd,bntd->bnst", q, k) / math.sqrt(hd)
    if source_embedding is not None:
        q2 = split(proj(hidden, params["wq_src"], params["bq_src"]))
        k2 = split(proj(source_embedding, params["wk_src"], params["bk_src"]))
        scores = scores + jnp.einsum("bnsd,bntd->bnst", q2, k2) / math.sqrt(hd)
    scores = scores + attn_mask[:, None, :, :]
    probs = jax.nn.softmax(scores, axis=-1)
    ctx = jnp.einsum("bnst,bntd->bnsd", probs, v).transpose(0, 2, 1, 3).reshape(B, S, H)
    a = ctx @ params["w_attn_out"] + params["b_attn_out"]
    y = a + hidden
    mu = jnp.mean(y, axis=-1, keepdims=True)
    var = jnp.mean((y - mu) ** 2, axis=-1, keepdims=True)
    return (y - mu) / jnp.sqrt(var + eps) * params["ln_g"] + params["ln_b"]


if __name__ == "__main__":
    # Small config: hidden=32, 4 heads (head_dim=8), B=2, S=8.
    B, S, H, NH = 2, 8, 32, 4
    f32 = jnp.float32

    key = jax.random.PRNGKey(0)
    ks = jax.random.split(key, 20)

    def init(k, shape, scale=0.02):
        return (scale * jax.random.normal(k, shape)).astype(f32)

    params = dict(
        wq=init(ks[0], (H, H)), bq=init(ks[1], (1, H)),
        wk=init(ks[2], (H, H)), bk=init(ks[3], (1, H)),
        wv=init(ks[4], (H, H)), bv=init(ks[5], (1, H)),
        w_attn_out=init(ks[6], (H, H)), b_attn_out=init(ks[7], (1, H)),
        ln_g=jnp.ones((1, H), f32), ln_b=jnp.zeros((1, H), f32),
        # SourceAttendsSubthread query/key linears
        wq_src=init(ks[8], (H, H)), bq_src=init(ks[9], (1, H)),
        wk_src=init(ks[10], (H, H)), bk_src=init(ks[11], (1, H)),
    )

    hidden = jax.random.normal(ks[12], (B, S, H), dtype=f32)
    source = jax.random.normal(ks[13], (B, S, H), dtype=f32)

    # Additive attention mask [B, 1, S]: batch 1 has its last two tokens masked.
    attn_mask = jnp.zeros((B, 1, S), f32)
    attn_mask = attn_mask.at[1, 0, S - 2:].set(-1e4)

    # Path 1: source_embedding=None (standard self-attention + SelfOutput).
    out1 = jax.block_until_ready(
        my_bert_attention(hidden, attn_mask, params, num_heads=NH))
    ref1 = _reference(hidden, attn_mask, params, num_heads=NH)

    # Path 2: with source_embedding (SourceAttendsSubthread scores added).
    out2 = jax.block_until_ready(
        my_bert_attention(hidden, attn_mask, params, num_heads=NH,
                          source_embedding=source))
    ref2 = _reference(hidden, attn_mask, params, num_heads=NH,
                      source_embedding=source)

    assert out1.shape == (B, S, H) and out1.dtype == f32
    assert out2.shape == (B, S, H) and out2.dtype == f32
    assert bool(jnp.all(jnp.isfinite(out1))) and bool(jnp.all(jnp.isfinite(out2)))

    err1 = float(jnp.max(jnp.abs(out1 - ref1)))
    err2 = float(jnp.max(jnp.abs(out2 - ref2)))
    assert err1 < 2e-2, f"no-source path mismatch: max abs err {err1}"
    assert err2 < 2e-2, f"source path mismatch: max abs err {err2}"

    print("KERNEL_OK")
</pallas_src>

<mosaic_0001>
module attributes {stable_mosaic.version = 11 : i64} {
  func.func @_my_bert_attention_kernel(%arg0: i32, %arg1: memref<1x8x32xf32, #tpu.memory_space<vmem>>, %arg2: memref<1x1x8xf32, #tpu.memory_space<vmem>>, %arg3: memref<32x96xf32, #tpu.memory_space<vmem>>, %arg4: memref<1x96xf32, #tpu.memory_space<vmem>>, %arg5: memref<4x8x32xf32, #tpu.memory_space<vmem>>, %arg6: memref<1x32xf32, #tpu.memory_space<vmem>>, %arg7: memref<1x32xf32, #tpu.memory_space<vmem>>, %arg8: memref<1x32xf32, #tpu.memory_space<vmem>>, %arg9: memref<1x8x32xf32, #tpu.memory_space<vmem>>) attributes {dimension_semantics = [#tpu.dimension_semantics<parallel>], iteration_bounds = array<i64: 2>, scalar_prefetch = 0 : i64, scratch_operands = 0 : i64, tpu.core_type = #tpu.core_type<tc>, window_params = [{transform_indices = @transform_0, window_bounds = array<i64: 1, 8, 32>}, {transform_indices = @transform_1, window_bounds = array<i64: 1, 1, 8>}, {pipeline_mode = #tpu.pipeline_mode<synchronous>, transform_indices = @transform_2, window_bounds = array<i64: 32, 96>}, {pipeline_mode = #tpu.pipeline_mode<synchronous>, transform_indices = @transform_3, window_bounds = array<i64: 1, 96>}, {pipeline_mode = #tpu.pipeline_mode<synchronous>, transform_indices = @transform_4, window_bounds = array<i64: 4, 8, 32>}, {pipeline_mode = #tpu.pipeline_mode<synchronous>, transform_indices = @transform_5, window_bounds = array<i64: 1, 32>}, {pipeline_mode = #tpu.pipeline_mode<synchronous>, transform_indices = @transform_6, window_bounds = array<i64: 1, 32>}, {pipeline_mode = #tpu.pipeline_mode<synchronous>, transform_indices = @transform_7, window_bounds = array<i64: 1, 32>}, {transform_indices = @transform_8, window_bounds = array<i64: 1, 8, 32>}]} {
    %c0 = arith.constant 0 : index
    %c0_0 = arith.constant 0 : index
    %c0_1 = arith.constant 0 : index
    %0 = vector.load %arg1[%c0, %c0_0, %c0_1] : memref<1x8x32xf32, #tpu.memory_space<vmem>>, vector<1x8x32xf32>
    %1 = vector.shape_cast %0 : vector<1x8x32xf32> to vector<8x32xf32>
    %c0_2 = arith.constant 0 : index
    %c0_3 = arith.constant 0 : index
    %c0_4 = arith.constant 0 : index
    %2 = vector.load %arg2[%c0_2, %c0_3, %c0_4] : memref<1x1x8xf32, #tpu.memory_space<vmem>>, vector<1x1x8xf32>
    %3 = vector.shape_cast %2 : vector<1x1x8xf32> to vector<1x8xf32>
    %c0_5 = arith.constant 0 : index
    %c0_6 = arith.constant 0 : index
    %4 = vector.load %arg3[%c0_5, %c0_6] : memref<32x96xf32, #tpu.memory_space<vmem>>, vector<32x96xf32>
    %cst = arith.constant dense<0.000000e+00> : vector<8x96xf32>
    %5 = tpu.matmul %1, %4, %cst {dimension_numbers = #tpu.dot_dimension_numbers<[1], [0], [0], [1], [0, 0, 1, 1], [], []>} : vector<8x32xf32>, vector<32x96xf32>, vector<8x96xf32> -> vector<8x96xf32>
    %c0_7 = arith.constant 0 : index
    %c0_8 = arith.constant 0 : index
    %6 = vector.load %arg4[%c0_7, %c0_8] : memref<1x96xf32, #tpu.memory_space<vmem>>, vector<1x96xf32>
    %7 = vector.broadcast %6 : vector<1x96xf32> to vector<8x96xf32>
    %8 = arith.addf %5, %7 : vector<8x96xf32>
    %c0_9 = arith.constant 0 : index
    %c0_10 = arith.constant 0 : index
    %c0_11 = arith.constant 0 : index
    %9 = vector.load %arg5[%c0_9, %c0_10, %c0_11] : memref<4x8x32xf32, #tpu.memory_space<vmem>>, vector<4x8x32xf32>
    %cst_12 = arith.constant 0.000000e+00 : f32
    %10 = vector.broadcast %cst_12 : f32 to vector<8x32xf32>
    %11 = vector.extract_strided_slice %8 {offsets = [0, 0], sizes = [8, 8], strides = [1, 1]} : vector<8x96xf32> to vector<8x8xf32>
    %12 = vector.extract_strided_slice %8 {offsets = [0, 32], sizes = [8, 8], strides = [1, 1]} : vector<8x96xf32> to vector<8x8xf32>
    %13 = vector.extract_strided_slice %8 {offsets = [0, 64], sizes = [8, 8], strides = [1, 1]} : vector<8x96xf32> to vector<8x8xf32>
    %cst_13 = arith.constant dense<0.000000e+00> : vector<8x8xf32>
    %14 = tpu.matmul %11, %12, %cst_13 {dimension_numbers = #tpu.dot_dimension_numbers<[1], [1], [0], [0], [0, 0, 1, 0], [], []>} : vector<8x8xf32>, vector<8x8xf32>, vector<8x8xf32> -> vector<8x8xf32>
    %cst_14 = arith.constant 0.353553385 : f32
    %15 = vector.broadcast %cst_14 : f32 to vector<8x8xf32>
    %16 = arith.mulf %14, %15 : vector<8x8xf32>
    %17 = vector.broadcast %3 : vector<1x8xf32> to vector<8x8xf32>
    %18 = arith.addf %16, %17 : vector<8x8xf32>
    %cst_15 = arith.constant dense<0xFF800000> : vector<8xf32>
    %19 = vector.multi_reduction <maximumf>, %18, %cst_15 [1] : vector<8x8xf32> to vector<8xf32>
    %20 = vector.shape_cast %19 : vector<8xf32> to vector<8x1xf32>
    %21 = vector.broadcast %20 : vector<8x1xf32> to vector<8x8xf32>
    %22 = arith.subf %18, %21 : vector<8x8xf32>
    %23 = math.exp %22 : vector<8x8xf32>
    %cst_16 = arith.constant dense<0.000000e+00> : vector<8xf32>
    %24 = vector.multi_reduction <add>, %23, %cst_16 [1] : vector<8x8xf32> to vector<8xf32>
    %25 = vector.shape_cast %24 : vector<8xf32> to vector<8x1xf32>
    %26 = tpu.reciprocal %25 {approx = true} : vector<8x1xf32> -> vector<8x1xf32>
    %27 = vector.broadcast %26 : vector<8x1xf32> to vector<8x8xf32>
    %28 = arith.mulf %23, %27 : vector<8x8xf32>
    %cst_17 = arith.constant dense<0.000000e+00> : vector<8x8xf32>
    %29 = tpu.matmul %28, %13, %cst_17 {dimension_numbers = #tpu.dot_dimension_numbers<[1], [0], [0], [1], [0, 0, 1, 1], [], []>} : vector<8x8xf32>, vector<8x8xf32>, vector<8x8xf32> -> vector<8x8xf32>
    %30 = vector.extract_strided_slice %9 {offsets = [0, 0, 0], sizes = [1, 8, 32], strides = [1, 1, 1]} : vector<4x8x32xf32> to vector<1x8x32xf32>
    %31 = vector.shape_cast %30 : vector<1x8x32xf32> to vector<8x32xf32>
    %cst_18 = arith.constant dense<0.000000e+00> : vector<8x32xf32>
    %32 = tpu.matmul %29, %31, %cst_18 {dimension_numbers = #tpu.dot_dimension_numbers<[1], [0], [0], [1], [0, 0, 1, 1], [], []>} : vector<8x8xf32>, vector<8x32xf32>, vector<8x32xf32> -> vector<8x32xf32>
    %33 = arith.addf %10, %32 : vector<8x32xf32>
    %34 = vector.extract_strided_slice %8 {offsets = [0, 8], sizes = [8, 8], strides = [1, 1]} : vector<8x96xf32> to vector<8x8xf32>
    %35 = vector.extract_strided_slice %8 {offsets = [0, 40], sizes = [8, 8], strides = [1, 1]} : vector<8x96xf32> to vector<8x8xf32>
    %36 = vector.extract_strided_slice %8 {offsets = [0, 72], sizes = [8, 8], strides = [1, 1]} : vector<8x96xf32> to vector<8x8xf32>
    %cst_19 = arith.constant dense<0.000000e+00> : vector<8x8xf32>
    %37 = tpu.matmul %34, %35, %cst_19 {dimension_numbers = #tpu.dot_dimension_numbers<[1], [1], [0], [0], [0, 0, 1, 0], [], []>} : vector<8x8xf32>, vector<8x8xf32>, vector<8x8xf32> -> vector<8x8xf32>
    %cst_20 = arith.constant 0.353553385 : f32
    %38 = vector.broadcast %cst_20 : f32 to vector<8x8xf32>
    %39 = arith.mulf %37, %38 : vector<8x8xf32>
    %40 = vector.broadcast %3 : vector<1x8xf32> to vector<8x8xf32>
    %41 = arith.addf %39, %40 : vector<8x8xf32>
    %cst_21 = arith.constant dense<0xFF800000> : vector<8xf32>
    %42 = vector.multi_reduction <maximumf>, %41, %cst_21 [1] : vector<8x8xf32> to vector<8xf32>
    %43 = vector.shape_cast %42 : vector<8xf32> to vector<8x1xf32>
    %44 = vector.broadcast %43 : vector<8x1xf32> to vector<8x8xf32>
    %45 = arith.subf %41, %44 : vector<8x8xf32>
    %46 = math.exp %45 : vector<8x8xf32>
    %cst_22 = arith.constant dense<0.000000e+00> : vector<8xf32>
    %47 = vector.multi_reduction <add>, %46, %cst_22 [1] : vector<8x8xf32> to vector<8xf32>
    %48 = vector.shape_cast %47 : vector<8xf32> to vector<8x1xf32>
    %49 = tpu.reciprocal %48 {approx = true} : vector<8x1xf32> -> vector<8x1xf32>
    %50 = vector.broadcast %49 : vector<8x1xf32> to vector<8x8xf32>
    %51 = arith.mulf %46, %50 : vector<8x8xf32>
    %cst_23 = arith.constant dense<0.000000e+00> : vector<8x8xf32>
    %52 = tpu.matmul %51, %36, %cst_23 {dimension_numbers = #tpu.dot_dimension_numbers<[1], [0], [0], [1], [0, 0, 1, 1], [], []>} : vector<8x8xf32>, vector<8x8xf32>, vector<8x8xf32> -> vector<8x8xf32>
    %53 = vector.extract_strided_slice %9 {offsets = [1, 0, 0], sizes = [1, 8, 32], strides = [1, 1, 1]} : vector<4x8x32xf32> to vector<1x8x32xf32>
    %54 = vector.shape_cast %53 : vector<1x8x32xf32> to vector<8x32xf32>
    %cst_24 = arith.constant dense<0.000000e+00> : vector<8x32xf32>
    %55 = tpu.matmul %52, %54, %cst_24 {dimension_numbers = #tpu.dot_dimension_numbers<[1], [0], [0], [1], [0, 0, 1, 1], [], []>} : vector<8x8xf32>, vector<8x32xf32>, vector<8x32xf32> -> vector<8x32xf32>
    %56 = arith.addf %33, %55 : vector<8x32xf32>
    %57 = vector.extract_strided_slice %8 {offsets = [0, 16], sizes = [8, 8], strides = [1, 1]} : vector<8x96xf32> to vector<8x8xf32>
    %58 = vector.extract_strided_slice %8 {offsets = [0, 48], sizes = [8, 8], strides = [1, 1]} : vector<8x96xf32> to vector<8x8xf32>
    %59 = vector.extract_strided_slice %8 {offsets = [0, 80], sizes = [8, 8], strides = [1, 1]} : vector<8x96xf32> to vector<8x8xf32>
    %cst_25 = arith.constant dense<0.000000e+00> : vector<8x8xf32>
    %60 = tpu.matmul %57, %58, %cst_25 {dimension_numbers = #tpu.dot_dimension_numbers<[1], [1], [0], [0], [0, 0, 1, 0], [], []>} : vector<8x8xf32>, vector<8x8xf32>, vector<8x8xf32> -> vector<8x8xf32>
    %cst_26 = arith.constant 0.353553385 : f32
    %61 = vector.broadcast %cst_26 : f32 to vector<8x8xf32>
    %62 = arith.mulf %60, %61 : vector<8x8xf32>
    %63 = vector.broadcast %3 : vector<1x8xf32> to vector<8x8xf32>
    %64 = arith.addf %62, %63 : vector<8x8xf32>
    %cst_27 = arith.constant dense<0xFF800000> : vector<8xf32>
    %65 = vector.multi_reduction <maximumf>, %64, %cst_27 [1] : vector<8x8xf32> to vector<8xf32>
    %66 = vector.shape_cast %65 : vector<8xf32> to vector<8x1xf32>
    %67 = vector.broadcast %66 : vector<8x1xf32> to vector<8x8xf32>
    %68 = arith.subf %64, %67 : vector<8x8xf32>
    %69 = math.exp %68 : vector<8x8xf32>
    %cst_28 = arith.constant dense<0.000000e+00> : vector<8xf32>
    %70 = vector.multi_reduction <add>, %69, %cst_28 [1] : vector<8x8xf32> to vector<8xf32>
    %71 = vector.shape_cast %70 : vector<8xf32> to vector<8x1xf32>
    %72 = tpu.reciprocal %71 {approx = true} : vector<8x1xf32> -> vector<8x1xf32>
    %73 = vector.broadcast %72 : vector<8x1xf32> to vector<8x8xf32>
    %74 = arith.mulf %69, %73 : vector<8x8xf32>
    %cst_29 = arith.constant dense<0.000000e+00> : vector<8x8xf32>
    %75 = tpu.matmul %74, %59, %cst_29 {dimension_numbers = #tpu.dot_dimension_numbers<[1], [0], [0], [1], [0, 0, 1, 1], [], []>} : vector<8x8xf32>, vector<8x8xf32>, vector<8x8xf32> -> vector<8x8xf32>
    %76 = vector.extract_strided_slice %9 {offsets = [2, 0, 0], sizes = [1, 8, 32], strides = [1, 1, 1]} : vector<4x8x32xf32> to vector<1x8x32xf32>
    %77 = vector.shape_cast %76 : vector<1x8x32xf32> to vector<8x32xf32>
    %cst_30 = arith.constant dense<0.000000e+00> : vector<8x32xf32>
    %78 = tpu.matmul %75, %77, %cst_30 {dimension_numbers = #tpu.dot_dimension_numbers<[1], [0], [0], [1], [0, 0, 1, 1], [], []>} : vector<8x8xf32>, vector<8x32xf32>, vector<8x32xf32> -> vector<8x32xf32>
    %79 = arith.addf %56, %78 : vector<8x32xf32>
    %80 = vector.extract_strided_slice %8 {offsets = [0, 24], sizes = [8, 8], strides = [1, 1]} : vector<8x96xf32> to vector<8x8xf32>
    %81 = vector.extract_strided_slice %8 {offsets = [0, 56], sizes = [8, 8], strides = [1, 1]} : vector<8x96xf32> to vector<8x8xf32>
    %82 = vector.extract_strided_slice %8 {offsets = [0, 88], sizes = [8, 8], strides = [1, 1]} : vector<8x96xf32> to vector<8x8xf32>
    %cst_31 = arith.constant dense<0.000000e+00> : vector<8x8xf32>
    %83 = tpu.matmul %80, %81, %cst_31 {dimension_numbers = #tpu.dot_dimension_numbers<[1], [1], [0], [0], [0, 0, 1, 0], [], []>} : vector<8x8xf32>, vector<8x8xf32>, vector<8x8xf32> -> vector<8x8xf32>
    %cst_32 = arith.constant 0.353553385 : f32
    %84 = vector.broadcast %cst_32 : f32 to vector<8x8xf32>
    %85 = arith.mulf %83, %84 : vector<8x8xf32>
    %86 = vector.broadcast %3 : vector<1x8xf32> to vector<8x8xf32>
    %87 = arith.addf %85, %86 : vector<8x8xf32>
    %cst_33 = arith.constant dense<0xFF800000> : vector<8xf32>
    %88 = vector.multi_reduction <maximumf>, %87, %cst_33 [1] : vector<8x8xf32> to vector<8xf32>
    %89 = vector.shape_cast %88 : vector<8xf32> to vector<8x1xf32>
    %90 = vector.broadcast %89 : vector<8x1xf32> to vector<8x8xf32>
    %91 = arith.subf %87, %90 : vector<8x8xf32>
    %92 = math.exp %91 : vector<8x8xf32>
    %cst_34 = arith.constant dense<0.000000e+00> : vector<8xf32>
    %93 = vector.multi_reduction <add>, %92, %cst_34 [1] : vector<8x8xf32> to vector<8xf32>
    %94 = vector.shape_cast %93 : vector<8xf32> to vector<8x1xf32>
    %95 = tpu.reciprocal %94 {approx = true} : vector<8x1xf32> -> vector<8x1xf32>
    %96 = vector.broadcast %95 : vector<8x1xf32> to vector<8x8xf32>
    %97 = arith.mulf %92, %96 : vector<8x8xf32>
    %cst_35 = arith.constant dense<0.000000e+00> : vector<8x8xf32>
    %98 = tpu.matmul %97, %82, %cst_35 {dimension_numbers = #tpu.dot_dimension_numbers<[1], [0], [0], [1], [0, 0, 1, 1], [], []>} : vector<8x8xf32>, vector<8x8xf32>, vector<8x8xf32> -> vector<8x8xf32>
    %99 = vector.extract_strided_slice %9 {offsets = [3, 0, 0], sizes = [1, 8, 32], strides = [1, 1, 1]} : vector<4x8x32xf32> to vector<1x8x32xf32>
    %100 = vector.shape_cast %99 : vector<1x8x32xf32> to vector<8x32xf32>
    %cst_36 = arith.constant dense<0.000000e+00> : vector<8x32xf32>
    %101 = tpu.matmul %98, %100, %cst_36 {dimension_numbers = #tpu.dot_dimension_numbers<[1], [0], [0], [1], [0, 0, 1, 1], [], []>} : vector<8x8xf32>, vector<8x32xf32>, vector<8x32xf32> -> vector<8x32xf32>
    %102 = arith.addf %79, %101 : vector<8x32xf32>
    %c0_37 = arith.constant 0 : index
    %c0_38 = arith.constant 0 : index
    %103 = vector.load %arg6[%c0_37, %c0_38] : memref<1x32xf32, #tpu.memory_space<vmem>>, vector<1x32xf32>
    %104 = vector.broadcast %103 : vector<1x32xf32> to vector<8x32xf32>
    %105 = arith.addf %102, %104 : vector<8x32xf32>
    %106 = arith.addf %105, %1 : vector<8x32xf32>
    %cst_39 = arith.constant dense<0.000000e+00> : vector<8xf32>
    %107 = vector.multi_reduction <add>, %106, %cst_39 [1] : vector<8x32xf32> to vector<8xf32>
    %108 = vector.shape_cast %107 : vector<8xf32> to vector<8x1xf32>
    %cst_40 = arith.constant 3.200000e+01 : f32
    %109 = vector.broadcast %cst_40 : f32 to vector<8x1xf32>
    %110 = arith.divf %108, %109 : vector<8x1xf32>
    %111 = vector.broadcast %110 : vector<8x1xf32> to vector<8x32xf32>
    %112 = arith.subf %106, %111 : vector<8x32xf32>
    %113 = arith.mulf %112, %112 : vector<8x32xf32>
    %cst_41 = arith.constant dense<0.000000e+00> : vector<8xf32>
    %114 = vector.multi_reduction <add>, %113, %cst_41 [1] : vector<8x32xf32> to vector<8xf32>
    %115 = vector.shape_cast %114 : vector<8xf32> to vector<8x1xf32>
    %cst_42 = arith.constant 3.200000e+01 : f32
    %116 = vector.broadcast %cst_42 : f32 to vector<8x1xf32>
    %117 = arith.divf %115, %116 : vector<8x1xf32>
    %118 = vector.broadcast %110 : vector<8x1xf32> to vector<8x32xf32>
    %119 = arith.subf %106, %118 : vector<8x32xf32>
    %cst_43 = arith.constant 9.99999996E-13 : f32
    %120 = vector.broadcast %cst_43 : f32 to vector<8x1xf32>
    %121 = arith.addf %117, %120 : vector<8x1xf32>
    %122 = math.rsqrt %121 : vector<8x1xf32>
    %123 = vector.broadcast %122 : vector<8x1xf32> to vector<8x32xf32>
    %124 = arith.mulf %119, %123 : vector<8x32xf32>
    %c0_44 = arith.constant 0 : index
    %c0_45 = arith.constant 0 : index
    %125 = vector.load %arg7[%c0_44, %c0_45] : memref<1x32xf32, #tpu.memory_space<vmem>>, vector<1x32xf32>
    %126 = vector.broadcast %125 : vector<1x32xf32> to vector<8x32xf32>
    %127 = arith.mulf %124, %126 : vector<8x32xf32>
    %c0_46 = arith.constant 0 : index
    %c0_47 = arith.constant 0 : index
    %128 = vector.load %arg8[%c0_46, %c0_47] : memref<1x32xf32, #tpu.memory_space<vmem>>, vector<1x32xf32>
    %129 = vector.broadcast %128 : vector<1x32xf32> to vector<8x32xf32>
    %130 = arith.addf %127, %129 : vector<8x32xf32>
    %c0_48 = arith.constant 0 : index
    %c0_49 = arith.constant 0 : index
    %c0_50 = arith.constant 0 : index
    %131 = vector.load %arg9[%c0_48, %c0_49, %c0_50] : memref<1x8x32xf32, #tpu.memory_space<vmem>>, vector<1x8x32xf32>
    %132 = vector.shape_cast %131 : vector<1x8x32xf32> to vector<8x32xf32>
    %133 = vector.shape_cast %130 : vector<8x32xf32> to vector<1x8x32xf32>
    tpu.vector_store %arg9[%c0_48, %c0_49, %c0_50], %133 {strides = array<i32>} : memref<1x8x32xf32, #tpu.memory_space<vmem>>, vector<1x8x32xf32>,
    return
  }
  func.func @transform_0(%arg0: i32) -> (i32, i32, i32) {
    %c0_i32 = arith.constant 0 : i32
    %c0_i32_0 = arith.constant 0 : i32
    %c0_i32_1 = arith.constant 0 : i32
    return %arg0, %c0_i32, %c0_i32_0 : i32, i32, i32
  }
  func.func @transform_1(%arg0: i32) -> (i32, i32, i32) {
    %c0_i32 = arith.constant 0 : i32
    %c0_i32_0 = arith.constant 0 : i32
    %c0_i32_1 = arith.constant 0 : i32
    return %arg0, %c0_i32, %c0_i32_0 : i32, i32, i32
  }
  func.func @transform_2(%arg0: i32) -> (i32, i32) {
    %c0_i32 = arith.constant 0 : i32
    %c0_i32_0 = arith.constant 0 : i32
    %c0_i32_1 = arith.constant 0 : i32
    return %c0_i32, %c0_i32_0 : i32, i32
  }
  func.func @transform_3(%arg0: i32) -> (i32, i32) {
    %c0_i32 = arith.constant 0 : i32
    %c0_i32_0 = arith.constant 0 : i32
    %c0_i32_1 = arith.constant 0 : i32
    return %c0_i32, %c0_i32_0 : i32, i32
  }
  func.func @transform_4(%arg0: i32) -> (i32, i32, i32) {
    %c0_i32 = arith.constant 0 : i32
    %c0_i32_0 = arith.constant 0 : i32
    %c0_i32_1 = arith.constant 0 : i32
    %c0_i32_2 = arith.constant 0 : i32
    return %c0_i32, %c0_i32_0, %c0_i32_1 : i32, i32, i32
  }
  func.func @transform_5(%arg0: i32) -> (i32, i32) {
    %c0_i32 = arith.constant 0 : i32
    %c0_i32_0 = arith.constant 0 : i32
    %c0_i32_1 = arith.constant 0 : i32
    return %c0_i32, %c0_i32_0 : i32, i32
  }
  func.func @transform_6(%arg0: i32) -> (i32, i32) {
    %c0_i32 = arith.constant 0 : i32
    %c0_i32_0 = arith.constant 0 : i32
    %c0_i32_1 = arith.constant 0 : i32
    return %c0_i32, %c0_i32_0 : i32, i32
  }
  func.func @transform_7(%arg0: i32) -> (i32, i32) {
    %c0_i32 = arith.constant 0 : i32
    %c0_i32_0 = arith.constant 0 : i32
    %c0_i32_1 = arith.constant 0 : i32
    return %c0_i32, %c0_i32_0 : i32, i32
  }
  func.func @transform_8(%arg0: i32) -> (i32, i32, i32) {
    %c0_i32 = arith.constant 0 : i32
    %c0_i32_0 = arith.constant 0 : i32
    %c0_i32_1 = arith.constant 0 : i32
    return %arg0, %c0_i32, %c0_i32_0 : i32, i32, i32
  }
}

</mosaic_0001>

<llo_original>
// kernel: tpu_custom_call.1
$region0: #{tpu_custom_call.1}
  #allocation0 [shape = 'u32[]', space=smem, size = 0x4, offset = 0x4, fixed_abs, tag = 'smem constant byte address 0x4 - core index']
  #allocation1 [shape = 'u32[144,128]{1,0:T(1,128)}', space=vmem, size = 0x12000, scoped, tag = 'internal scratch']
  %s0 = inlined_call_operand.hbm [shape: f32[2,8,32], index: 0, kind: input, shape index: {}]
  %s1 = inlined_call_operand.vmem [shape: f32[2,1,8], index: 1, kind: input, shape index: {}]
  %s2 = inlined_call_operand.hbm [shape: f32[32,96], index: 2, kind: input, shape index: {}]
  %s3 = inlined_call_operand.vmem [shape: f32[1,96], index: 3, kind: input, shape index: {}]
  %s4 = inlined_call_operand.hbm [shape: f32[4,8,32], index: 4, kind: input, shape index: {}]
  %s5 = inlined_call_operand.vmem [shape: f32[1,32], index: 5, kind: input, shape index: {}]
  %s6 = inlined_call_operand.vmem [shape: f32[1,32], index: 6, kind: input, shape index: {}]
  %s7 = inlined_call_operand.vmem [shape: f32[1,32], index: 7, kind: input, shape index: {}]
  %s8 = inlined_call_operand.hbm [shape: f32[2,8,32], index: 8, kind: output, shape index: {}]
  %s9 = sld [smem:[#allocation0]]
  $region77: #{tpu_custom_call.1} parent=0
    _
  %s11 = ssub.s32 1, %s9
  %s12 = scalar_select 0, %s11, %s9
  $region1: #{tpu_custom_call.1} parent=0
    #allocation2 [shape = 'u8[8192]{0}', space=vmem, size = 0x2000, scoped, tag = 'input window, operand 0']
    #allocation3 [shape = 's32[2]{0}', space=sflag, size = 0x8, scoped, tag = 'scoped memory for tpu_custom_call.1']
    #allocation4 [shape = 's32[2]{0}', space=sflag, size = 0x8, scoped, tag = 'scoped memory for tpu_custom_call.1']
    #allocation5 [shape = 'u8[16384]{0}', space=vmem, size = 0x4000, scoped, tag = 'input window, operand 2, single buffered']
    #allocation6 [shape = 's32[1]{0}', space=sflag, size = 0x4, scoped, tag = 'scoped memory for tpu_custom_call.1']
    #allocation7 [shape = 'u8[16384]{0}', space=vmem, size = 0x4000, scoped, tag = 'input window, operand 4, single buffered']
    #allocation8 [shape = 'u8[8192]{0}', space=vmem, size = 0x2000, scoped, tag = 'output window, operand 0']
    %13 = vsyncpa [#allocation3], 0
    %s14 = scalar_lea.sflag [#allocation3], 1
    %15 = vsyncpa %s14, 0
    %16 = vsyncpa [#allocation6], 0
    %17 = vsyncpa [#allocation4], 0
    %s18 = scalar_lea.sflag [#allocation4], 1
    %19 = vsyncpa %s18, 0
    loop: start=0, step=1, limit=4
    $region2: #{tpu_custom_call.1} parent=1 // loop_pre_header
      _
    $region3: #{tpu_custom_call.1} parent=1 // loop_header
      %s21 = sphi 0, %s25
      %p22 = scmp.ge.s32.totalorder %s21, 4
      %s31 = sphi 0, %s33
      %s34 = sphi 0, %s31
      %s35 = sphi 0, %s34
      %s51 = sphi 0, %s35
      %s57 = sphi 0, %s59
      %s60 = sphi 0, %s57
      %s61 = sphi 0, %s60
      %s77 = sphi 0, %s61
      %s81 = sphi 0, %s81
      %s83 = sphi 0, %s81
      %s84 = sphi 0, %s83
      %s98 = sphi 0, %s84
      %s102 = sphi 0, %s102
      %s104 = sphi 0, %s102
      %s105 = sphi 0, %s104
      %s119 = sphi 0, %s105
      %s123 = sphi 0, %s123
      %s125 = sphi 0, %s123
      %s126 = sphi 0, %s125
      %s140 = sphi 0, %s126
      %s144 = sphi 0, %s144
      %s146 = sphi 0, %s144
      %s147 = sphi 0, %s146
      %s161 = sphi 0, %s147
      %s165 = sphi 0, %s165
      %s167 = sphi 0, %s165
      %s168 = sphi 0, %s167
      %s182 = sphi 0, %s168
      %s186 = sphi 0, %s186
      %s188 = sphi 0, %s186
      %s189 = sphi 0, %s188
      %s203 = sphi 0, %s189
      %s209 = sphi 0, %s211
      %s212 = sphi 0, %s209
      %s213 = sphi 0, %s212
      %s229 = sphi 0, %s213
    $region4: #{tpu_custom_call.1} parent=1 // loop_header_branch
      %24 = sbr.rel (%p22) target = $region8
    $region5: #{tpu_custom_call.1} parent=1 // loop_body
      %s26 = ssub.s32 %s21, 1
      %s27 = ssub.s32 %s21, 2
      %s28 = sadd.s32 %s21, 1
      %s29 = ssub.s32 %s21, %s28
      %p30 = scmp.eq.s32.totalorder %s29, 0
      %s32 = sadd.s32 %s31, 1
      %s33 = scalar_select %p30, %s31, %s32
      %p36 = pneg %p30
      %p37 = scmp.eq.s32.totalorder %s21, 1
      %p38 = por %p36, %p37
      %p39 = scmp.ne.s32.totalorder %s31, %s34
      %p40 = scmp.eq.s32.totalorder %s21, 0
      %p41 = por %p39, %p40
      %p42 = scmp.ne.s32.totalorder %s31, %s34
      %p43 = scmp.eq.s32.totalorder %s26, 1
      %p44 = por %p42, %p43
      %p45 = scmp.ne.s32.totalorder %s34, %s35
      %p46 = scmp.eq.s32.totalorder %s26, 0
      %p47 = por %p45, %p46
      %p48 = scmp.ne.s32.totalorder %s34, %s35
      %p49 = scmp.eq.s32.totalorder %s27, 1
      %p50 = por %p48, %p49
      %p52 = scmp.ne.s32.totalorder %s35, %s51
      %p53 = scmp.eq.s32.totalorder %s27, 0
      %p54 = por %p52, %p53
      %s55 = ssub.s32 %s21, %s28
      %p56 = scmp.eq.s32.totalorder %s55, 0
      %s58 = sadd.s32 %s57, 1
      %s59 = scalar_select %p56, %s57, %s58
      %p62 = pneg %p56
      %p63 = scmp.eq.s32.totalorder %s21, 1
      %p64 = por %p62, %p63
      %p65 = scmp.ne.s32.totalorder %s57, %s60
      %p66 = scmp.eq.s32.totalorder %s21, 0
      %p67 = por %p65, %p66
      %p68 = scmp.ne.s32.totalorder %s57, %s60
      %p69 = scmp.eq.s32.totalorder %s26, 1
      %p70 = por %p68, %p69
      %p71 = scmp.ne.s32.totalorder %s60, %s61
      %p72 = scmp.eq.s32.totalorder %s26, 0
      %p73 = por %p71, %p72
      %p74 = scmp.ne.s32.totalorder %s60, %s61
      %p75 = scmp.eq.s32.totalorder %s27, 1
      %p76 = por %p74, %p75
      %p78 = scmp.ne.s32.totalorder %s61, %s77
      %p79 = scmp.eq.s32.totalorder %s27, 0
      %p80 = por %p78, %p79
      %s82 = sadd.s32 %s81, 1
      %p85 = scmp.eq.s32.totalorder %s21, 1
      %p86 = scmp.ne.s32.totalorder %s81, %s83
      %p87 = scmp.eq.s32.totalorder %s21, 0
      %p88 = por %p86, %p87
      %p89 = scmp.ne.s32.totalorder %s81, %s83
      %p90 = scmp.eq.s32.totalorder %s26, 1
      %p91 = por %p89, %p90
      %p92 = scmp.ne.s32.totalorder %s83, %s84
      %p93 = scmp.eq.s32.totalorder %s26, 0
      %p94 = por %p92, %p93
      %p95 = scmp.ne.s32.totalorder %s83, %s84
      %p96 = scmp.eq.s32.totalorder %s27, 1
      %p97 = por %p95, %p96
      %p99 = scmp.ne.s32.totalorder %s84, %s98
      %p100 = scmp.eq.s32.totalorder %s27, 0
      %p101 = por %p99, %p100
      %s103 = sadd.s32 %s102, 1
      %p106 = scmp.eq.s32.totalorder %s21, 1
      %p107 = scmp.ne.s32.totalorder %s102, %s104
      %p108 = scmp.eq.s32.totalorder %s21, 0
      %p109 = por %p107, %p108
      %p110 = scmp.ne.s32.totalorder %s102, %s104
      %p111 = scmp.eq.s32.totalorder %s26, 1
      %p112 = por %p110, %p111
      %p113 = scmp.ne.s32.totalorder %s104, %s105
      %p114 = scmp.eq.s32.totalorder %s26, 0
      %p115 = por %p113, %p114
      %p116 = scmp.ne.s32.totalorder %s104, %s105
      %p117 = scmp.eq.s32.totalorder %s27, 1
      %p118 = por %p116, %p117
      %p120 = scmp.ne.s32.totalorder %s105, %s119
      %p121 = scmp.eq.s32.totalorder %s27, 0
      %p122 = por %p120, %p121
      %s124 = sadd.s32 %s123, 1
      %p127 = scmp.eq.s32.totalorder %s21, 1
      %p128 = scmp.ne.s32.totalorder %s123, %s125
      %p129 = scmp.eq.s32.totalorder %s21, 0
      %p130 = por %p128, %p129
      %p131 = scmp.ne.s32.totalorder %s123, %s125
      %p132 = scmp.eq.s32.totalorder %s26, 1
      %p133 = por %p131, %p132
      %p134 = scmp.ne.s32.totalorder %s125, %s126
      %p135 = scmp.eq.s32.totalorder %s26, 0
      %p136 = por %p134, %p135
      %p137 = scmp.ne.s32.totalorder %s125, %s126
      %p138 = scmp.eq.s32.totalorder %s27, 1
      %p139 = por %p137, %p138
      %p141 = scmp.ne.s32.totalorder %s126, %s140
      %p142 = scmp.eq.s32.totalorder %s27, 0
      %p143 = por %p141, %p142
      %s145 = sadd.s32 %s144, 1
      %p148 = scmp.eq.s32.totalorder %s21, 1
      %p149 = scmp.ne.s32.totalorder %s144, %s146
      %p150 = scmp.eq.s32.totalorder %s21, 0
      %p151 = por %p149, %p150
      %p152 = scmp.ne.s32.totalorder %s144, %s146
      %p153 = scmp.eq.s32.totalorder %s26, 1
      %p154 = por %p152, %p153
      %p155 = scmp.ne.s32.totalorder %s146, %s147
      %p156 = scmp.eq.s32.totalorder %s26, 0
      %p157 = por %p155, %p156
      %p158 = scmp.ne.s32.totalorder %s146, %s147
      %p159 = scmp.eq.s32.totalorder %s27, 1
      %p160 = por %p158, %p159
      %p162 = scmp.ne.s32.totalorder %s147, %s161
      %p163 = scmp.eq.s32.totalorder %s27, 0
      %p164 = por %p162, %p163
      %s166 = sadd.s32 %s165, 1
      %p169 = scmp.eq.s32.totalorder %s21, 1
      %p170 = scmp.ne.s32.totalorder %s165, %s167
      %p171 = scmp.eq.s32.totalorder %s21, 0
      %p172 = por %p170, %p171
      %p173 = scmp.ne.s32.totalorder %s165, %s167
      %p174 = scmp.eq.s32.totalorder %s26, 1
      %p175 = por %p173, %p174
      %p176 = scmp.ne.s32.totalorder %s167, %s168
      %p177 = scmp.eq.s32.totalorder %s26, 0
      %p178 = por %p176, %p177
      %p179 = scmp.ne.s32.totalorder %s167, %s168
      %p180 = scmp.eq.s32.totalorder %s27, 1
      %p181 = por %p179, %p180
      %p183 = scmp.ne.s32.totalorder %s168, %s182
      %p184 = scmp.eq.s32.totalorder %s27, 0
      %p185 = por %p183, %p184
      %s187 = sadd.s32 %s186, 1
      %p190 = scmp.eq.s32.totalorder %s21, 1
      %p191 = scmp.ne.s32.totalorder %s186, %s188
      %p192 = scmp.eq.s32.totalorder %s21, 0
      %p193 = por %p191, %p192
      %p194 = scmp.ne.s32.totalorder %s186, %s188
      %p195 = scmp.eq.s32.totalorder %s26, 1
      %p196 = por %p194, %p195
      %p197 = scmp.ne.s32.totalorder %s188, %s189
      %p198 = scmp.eq.s32.totalorder %s26, 0
      %p199 = por %p197, %p198
      %p200 = scmp.ne.s32.totalorder %s188, %s189
      %p201 = scmp.eq.s32.totalorder %s27, 1
      %p202 = por %p200, %p201
      %p204 = scmp.ne.s32.totalorder %s189, %s203
      %p205 = scmp.eq.s32.totalorder %s27, 0
      %p206 = por %p204, %p205
      %s207 = ssub.s32 %s21, %s28
      %p208 = scmp.eq.s32.totalorder %s207, 0
      %s210 = sadd.s32 %s209, 1
      %s211 = scalar_select %p208, %s209, %s210
      %p214 = pneg %p208
      %p215 = scmp.eq.s32.totalorder %s21, 1
      %p216 = por %p214, %p215
      %p217 = scmp.ne.s32.totalorder %s209, %s212
      %p218 = scmp.eq.s32.totalorder %s21, 0
      %p219 = por %p217, %p218
      %p220 = scmp.ne.s32.totalorder %s209, %s212
      %p221 = scmp.eq.s32.totalorder %s26, 1
      %p222 = por %p220, %p221
      %p223 = scmp.ne.s32.totalorder %s212, %s213
      %p224 = scmp.eq.s32.totalorder %s26, 0
      %p225 = por %p223, %p224
      %p226 = scmp.ne.s32.totalorder %s212, %s213
      %p227 = scmp.eq.s32.totalorder %s27, 1
      %p228 = por %p226, %p227
      %p230 = scmp.ne.s32.totalorder %s213, %s229
      %p231 = scmp.eq.s32.totalorder %s27, 0
      %p232 = por %p230, %p231
      %p233 = scmp.le.s32.totalorder 1, %s21
      %p234 = scmp.lt.s32.totalorder %s21, 3
      %p235 = pnand %p233, %p234
      %p236 = pneg %p235
      // Predicated region
      $region9: #{tpu_custom_call.1} parent=5 // pred_check
        _
      $region10: #{tpu_custom_call.1} parent=5 // pred_check_branch
        %238 = sbr.rel (%p235) target = $region12
      $region11: #{tpu_custom_call.1} parent=5 // pred_region
        %s239 = ssub.s32 %s21, 1
        // Predicated region
        $region13: #{tpu_custom_call.1} parent=11 // pred_check
          %p240 = pneg %p94
        $region14: #{tpu_custom_call.1} parent=11 // pred_check_branch
          %242 = sbr.rel (%p240) target = $region16
        $region15: #{tpu_custom_call.1} parent=11 // pred_region
          %s244 = ssub.s32 512, 512
          %245 = vsyncadd [#allocation6], %s244
          %s246 = sshll.u32 [#allocation5], 4
          %s247 = int_to_ptr.vmem [resolvable:$true] %s246
          %252 = dma.hbm_to_vmem [thread:$0]  %s2, 512, %s247, [#allocation6], 128, 128, 8
        $region16: #{tpu_custom_call.1} parent=11 // pred_fallthru
          _
        // Predicated region
        $region17: #{tpu_custom_call.1} parent=11 // pred_check
          %p253 = pneg %p115
        $region18: #{tpu_custom_call.1} parent=11 // pred_check_branch
          %255 = sbr.rel (%p253) target = $region20
        $region19: #{tpu_custom_call.1} parent=11 // pred_region
          _
        $region20: #{tpu_custom_call.1} parent=11 // pred_fallthru
          _
        // Predicated region
        $region21: #{tpu_custom_call.1} parent=11 // pred_check
          %p256 = pneg %p136
        $region22: #{tpu_custom_call.1} parent=11 // pred_check_branch
          %258 = sbr.rel (%p256) target = $region24
        $region23: #{tpu_custom_call.1} parent=11 // pred_region
          %s260 = ssub.s32 512, 512
          %261 = vsyncadd [#allocation6], %s260
          %s262 = sshll.u32 [#allocation7], 4
          %s263 = int_to_ptr.vmem [resolvable:$true] %s262
          %268 = dma.hbm_to_vmem [thread:$0]  %s4, 512, %s263, [#allocation6], 128, 128, 8
        $region24: #{tpu_custom_call.1} parent=11 // pred_fallthru
          _
        // Predicated region
        $region25: #{tpu_custom_call.1} parent=11 // pred_check
          %p269 = pneg %p157
        $region26: #{tpu_custom_call.1} parent=11 // pred_check_branch
          %271 = sbr.rel (%p269) target = $region28
        $region27: #{tpu_custom_call.1} parent=11 // pred_region
          _
        $region28: #{tpu_custom_call.1} parent=11 // pred_fallthru
          _
        // Predicated region
        $region29: #{tpu_custom_call.1} parent=11 // pred_check
          %p272 = pneg %p178
        $region30: #{tpu_custom_call.1} parent=11 // pred_check_branch
          %274 = sbr.rel (%p272) target = $region32
        $region31: #{tpu_custom_call.1} parent=11 // pred_region
          _
        $region32: #{tpu_custom_call.1} parent=11 // pred_fallthru
          _
        // Predicated region
        $region33: #{tpu_custom_call.1} parent=11 // pred_check
          %p275 = pneg %p199
        $region34: #{tpu_custom_call.1} parent=11 // pred_check_branch
          %277 = sbr.rel (%p275) target = $region36
        $region35: #{tpu_custom_call.1} parent=11 // pred_region
          _
        $region36: #{tpu_custom_call.1} parent=11 // pred_fallthru
          _
      $region12: #{tpu_custom_call.1} parent=5 // pred_fallthru
        _
      %p278 = scmp.lt.s32.totalorder %s21, 2
      // Predicated region
      $region37: #{tpu_custom_call.1} parent=5 // pred_check
        %p279 = pneg %p278
      $region38: #{tpu_custom_call.1} parent=5 // pred_check_branch
        %281 = sbr.rel (%p279) target = $region40
      $region39: #{tpu_custom_call.1} parent=5 // pred_region
        // Predicated region
        $region41: #{tpu_custom_call.1} parent=39 // pred_check
          %p282 = pneg %p41
        $region42: #{tpu_custom_call.1} parent=39 // pred_check_branch
          %284 = sbr.rel (%p282) target = $region44
        $region43: #{tpu_custom_call.1} parent=39 // pred_region
          %s285 = sand.u32 %s31, 1
          %s286 = scalar_lea.sflag [#allocation3], %s285
          %s287 = sand.u32 %s31, 1
          %s288 = smul.addr %s287, 8
          %s289 = scalar_lea.vmem [#allocation2], %s288
          %s291 = ssub.s32 128, 128
          %292 = vsyncadd %s286, %s291
          %s293 = smul.addr %s21, 128
          %s294 = scalar_lea.hbm %s0, %s293
          %s296 = sshll.u32 %s289, 4
          %s297 = int_to_ptr.vmem [resolvable:$true] %s296
          %299 = dma.hbm_to_vmem [thread:$0]  %s294, 128, %s297, %s286
        $region44: #{tpu_custom_call.1} parent=39 // pred_fallthru
          _
        // Predicated region
        $region45: #{tpu_custom_call.1} parent=39 // pred_check
          %p300 = pneg %p67
        $region46: #{tpu_custom_call.1} parent=39 // pred_check_branch
          %302 = sbr.rel (%p300) target = $region48
        $region47: #{tpu_custom_call.1} parent=39 // pred_region
          %p303 = scmp.lt.s32.totalorder %s21, 1
          %s304 = scalar_select %p303, %s21, 1
          %s305 = scalar_lea.vmem %s1, %s304
        $region48: #{tpu_custom_call.1} parent=39 // pred_fallthru
          _
      $region40: #{tpu_custom_call.1} parent=5 // pred_fallthru
        _
      %p306 = scmp.le.s32.totalorder 1, %s21
      %p307 = scmp.lt.s32.totalorder %s21, 3
      %p308 = pnand %p306, %p307
      %p309 = pneg %p308
      // Predicated region
      $region49: #{tpu_custom_call.1} parent=5 // pred_check
        _
      $region50: #{tpu_custom_call.1} parent=5 // pred_check_branch
        %311 = sbr.rel (%p308) target = $region52
      $region51: #{tpu_custom_call.1} parent=5 // pred_region
        %s312 = ssub.s32 %s21, 1
        %s313 = sand.u32 %s34, 1
        %s314 = scalar_lea.sflag [#allocation3], %s313
        %s315 = sand.u32 %s34, 1
        %s316 = smul.addr %s315, 8
        %s317 = scalar_lea.vmem [#allocation2], %s316
        // Predicated region
        $region53: #{tpu_custom_call.1} parent=51 // pred_check
          %p318 = pneg %p47
        $region54: #{tpu_custom_call.1} parent=51 // pred_check_branch
          %320 = sbr.rel (%p318) target = $region56
        $region55: #{tpu_custom_call.1} parent=51 // pred_region
          %321 = dma.done %s314, 128
        $region56: #{tpu_custom_call.1} parent=51 // pred_fallthru
          _
        // Predicated region
        $region57: #{tpu_custom_call.1} parent=51 // pred_check
          %p322 = pneg %p94
        $region58: #{tpu_custom_call.1} parent=51 // pred_check_branch
          %324 = sbr.rel (%p322) target = $region60
        $region59: #{tpu_custom_call.1} parent=51 // pred_region
          %325 = dma.done [#allocation6], 512
        $region60: #{tpu_custom_call.1} parent=51 // pred_fallthru
          _
        // Predicated region
        $region61: #{tpu_custom_call.1} parent=51 // pred_check
          %p326 = pneg %p136
        $region62: #{tpu_custom_call.1} parent=51 // pred_check_branch
          %328 = sbr.rel (%p326) target = $region64
        $region63: #{tpu_custom_call.1} parent=51 // pred_region
          %329 = dma.done [#allocation6], 512
        $region64: #{tpu_custom_call.1} parent=51 // pred_fallthru
          _
        %s330 = sand.u32 %s34, 1
        %s331 = scalar_lea.sflag [#allocation3], %s330
        %s332 = sand.u32 %s34, 1
        %s333 = smul.addr %s332, 8
        %s334 = scalar_lea.vmem [#allocation2], %s333
        %p335 = pneg %p47
        %p336 = pneg %p44
        %p337 = scmp.lt.s32.totalorder %s26, 1
        %s338 = scalar_select %p337, %s26, 1
        %s339 = scalar_lea.vmem %s1, %s338
        %p340 = pneg %p73
        %p341 = pneg %p70
        %p342 = pneg %p94
        %p343 = pneg %p91
        %p344 = pneg %p115
        %p345 = pneg %p112
        %p346 = pneg %p136
        %p347 = pneg %p133
        %p348 = pneg %p157
        %p349 = pneg %p154
        %p350 = pneg %p178
        %p351 = pneg %p175
        %p352 = pneg %p199
        %p353 = pneg %p196
        %p354 = pneg %p225
        %p355 = pneg %p222
        %s356 = sand.u32 %s212, 1
        %s357 = scalar_lea.sflag [#allocation4], %s356
        %s358 = sand.u32 %s212, 1
        %s359 = smul.addr %s358, 8
        %s360 = scalar_lea.vmem [#allocation8], %s359
        %p361 = scmp.lt.s32.totalorder %s26, 1
        %s362 = scalar_select %p361, %s26, 1
        %s363 = scalar_lea.vmem %s1, %s362
        %v364 = vld [vmem:[%s317] sm:$0xff]
        %v365 = vld [vmem:[%s363] sm:$0x1]
        %v366 = vld [vmem:[#allocation5] sm:$0xff]
        %v367 = vld [vmem:[#allocation5 + $0x8] sm:$0xff]
        %v368 = vld [vmem:[#allocation5 + $0x10] sm:$0xff]
        %v369 = vld [vmem:[#allocation5 + $0x18] sm:$0xff]
        %v370 = vld [vmem:[%s3] sm:$0x1]
        %v372 = vlaneseq
        %v373 = vshrl.u32 %v372, 7
        %v374 = vsub.s32 0, %v373
        %v375 = vrot.slane %v370, %v374
        %vm377 = vcmask 261120
        %v379 = vsel %vm377, %v364, 0
        %381 = vmatprep.subr.mxu0 0.0
        %382 = vmatpush1.msra.mxu0 %v366
        %383 = vmatprep.subr.mxu0 0.0
        %384 = vmatpush1.msra.mxu0 %v367
        %385 = vmatprep.subr.mxu0 0.0
        %386 = vmatpush1.msra.mxu0 %v368
        %387 = vmatprep.subr.mxu0 0.0
        %388 = vmatpush1.msra.mxu0 %v369
        %389 = vmatprep.subr.mxu0 0.0
        %390 = vmatpush1.msra.mxu0 0.0
        %391 = vmatprep.subr.mxu0 0.0
        %392 = vmatpush1.msra.mxu0 0.0
        %393 = vmatprep.subr.mxu0 0.0
        %394 = vmatpush1.msra.mxu0 0.0
        %395 = vmatprep.subr.mxu0 0.0
        %396 = vmatpush1.msra.mxu0 0.0
        %397 = vmatprep.subr.mxu0 0.0
        %398 = vmatpush1.msra.mxu0 0.0
        %399 = vmatprep.subr.mxu0 0.0
        %400 = vmatpush1.msra.mxu0 0.0
        %401 = vmatprep.subr.mxu0 0.0
        %402 = vmatpush1.msra.mxu0 0.0
        %403 = vmatprep.subr.mxu0 0.0
        %404 = vmatpush1.msra.mxu0 0.0
        %405 = vmatprep.subr.mxu0 0.0
        %406 = vmatpush1.msra.mxu0 0.0
        %407 = vmatprep.subr.mxu0 0.0
        %408 = vmatpush1.msra.mxu0 0.0
        %409 = vmatprep.subr.mxu0 0.0
        %410 = vmatpush1.msra.mxu0 0.0
        %411 = vmatprep.subr.mxu0 0.0
        %412 = vmatpush1.msra.mxu0 0.0
        %413 = vmatprep.subr.mxu0 0.0
        %414 = vmatpush1.msra.mxu0 0.0
        %415 = vmatprep.subr.mxu0 0.0
        %416 = vmatpush1.msra.mxu0 0.0
        %417 = vmatprep.subr.mxu0 0.0
        %418 = vmatpush1.msra.mxu0 0.0
        %419 = vmatprep.subr.mxu0 0.0
        %420 = vmatpush1.msra.mxu0 0.0
        %421 = vmatprep.subr.mxu0 0.0
        %422 = vmatpush1.msra.mxu0 0.0
        %423 = vmatprep.subr.mxu0 0.0
        %424 = vmatpush1.msra.mxu0 0.0
        %425 = vmatprep.subr.mxu0 0.0
        %426 = vmatpush1.msra.mxu0 0.0
        %427 = vmatprep.subr.mxu0 0.0
        %428 = vmatpush1.msra.mxu0 0.0
        %429 = vmatprep.subr.mxu0 0.0
        %430 = vmatpush1.msra.mxu0 0.0
        %431 = vmatprep.subr.mxu0 0.0
        %432 = vmatpush1.msra.mxu0 0.0
        %433 = vmatprep.subr.mxu0 0.0
        %434 = vmatpush1.msra.mxu0 0.0
        %435 = vmatprep.subr.mxu0 0.0
        %436 = vmatpush1.msra.mxu0 0.0
        %437 = vmatprep.subr.mxu0 0.0
        %438 = vmatpush1.msra.mxu0 0.0
        %439 = vmatprep.subr.mxu0 0.0
        %440 = vmatpush1.msra.mxu0 0.0
        %441 = vmatprep.subr.mxu0 0.0
        %442 = vmatpush1.msra.mxu0 0.0
        %443 = vmatprep.subr.mxu0 0.0
        %444 = vmatpush1.msra.mxu0 0.0
        %445 = vmatprep.mubr.f32.mxu0 0.0
        %446 = vmatmul.mubr.f32.gmra.mrb[0].mxu0 %v379
        %v447 = vpop.f32.mrb[0].mxu0
        %v448 = vadd.f32 %v375, %v447
        %v449 = vpop.f32.mrb[0].mxu0
        %450 = vdwg.mxu0
        %v451 = vld [vmem:[#allocation7] sm:$0xff]
        %v452 = vld [vmem:[#allocation7 + $0x8] sm:$0xff]
        %v453 = vld [vmem:[#allocation7 + $0x10] sm:$0xff]
        %v454 = vld [vmem:[#allocation7 + $0x18] sm:$0xff]
        %456 = vrot.lane.b32.xlu0 %v448, 96
        %v457 = vpop.permute.xlu0 %456
        %vm458 = vcmask 64512
        %v459 = vsel %vm458, %v448, 0
        %v461 = vsel %vm458, %v457, 0
        %463 = vmatprep.subr.mxu0 0.0
        %464 = vmatpush1.xpose.msra.mxu0 %v461
        %465 = vmatprep.subr.mxu0 0.0
        %466 = vmatpush1.xpose.msra.mxu0 0.0
        %467 = vmatprep.subr.mxu0 0.0
        %468 = vmatpush1.xpose.msra.mxu0 0.0
        %469 = vmatprep.subr.mxu0 0.0
        %470 = vmatpush1.xpose.msra.mxu0 0.0
        %471 = vmatprep.subr.mxu0 0.0
        %472 = vmatpush1.xpose.msra.mxu0 0.0
        %473 = vmatprep.subr.mxu0 0.0
        %474 = vmatpush1.xpose.msra.mxu0 0.0
        %475 = vmatprep.subr.mxu0 0.0
        %476 = vmatpush1.xpose.msra.mxu0 0.0
        %477 = vmatprep.subr.mxu0 0.0
        %478 = vmatpush1.xpose.msra.mxu0 0.0
        %479 = vmatprep.subr.mxu0 0.0
        %480 = vmatpush1.xpose.msra.mxu0 0.0
        %481 = vmatprep.subr.mxu0 0.0
        %482 = vmatpush1.xpose.msra.mxu0 0.0
        %483 = vmatprep.subr.mxu0 0.0
        %484 = vmatpush1.xpose.msra.mxu0 0.0
        %485 = vmatprep.subr.mxu0 0.0
        %486 = vmatpush1.xpose.msra.mxu0 0.0
        %487 = vmatprep.subr.mxu0 0.0
        %488 = vmatpush1.xpose.msra.mxu0 0.0
        %489 = vmatprep.subr.mxu0 0.0
        %490 = vmatpush1.xpose.msra.mxu0 0.0
        %491 = vmatprep.subr.mxu0 0.0
        %492 = vmatpush1.xpose.msra.mxu0 0.0
        %493 = vmatprep.subr.mxu0 0.0
        %494 = vmatpush1.xpose.msra.mxu0 0.0
        %495 = vmatprep.subr.mxu0 0.0
        %496 = vmatpush1.xpose.msra.mxu0 0.0
        %497 = vmatprep.subr.mxu0 0.0
        %498 = vmatpush1.xpose.msra.mxu0 0.0
        %499 = vmatprep.subr.mxu0 0.0
        %500 = vmatpush1.xpose.msra.mxu0 0.0
        %501 = vmatprep.subr.mxu0 0.0
        %502 = vmatpush1.xpose.msra.mxu0 0.0
        %503 = vmatprep.subr.mxu0 0.0
        %504 = vmatpush1.xpose.msra.mxu0 0.0
        %505 = vmatprep.subr.mxu0 0.0
        %506 = vmatpush1.xpose.msra.mxu0 0.0
        %507 = vmatprep.subr.mxu0 0.0
        %508 = vmatpush1.xpose.msra.mxu0 0.0
        %509 = vmatprep.subr.mxu0 0.0
        %510 = vmatpush1.xpose.msra.mxu0 0.0
        %511 = vmatprep.subr.mxu0 0.0
        %512 = vmatpush1.xpose.msra.mxu0 0.0
        %513 = vmatprep.subr.mxu0 0.0
        %514 = vmatpush1.xpose.msra.mxu0 0.0
        %515 = vmatprep.subr.mxu0 0.0
        %516 = vmatpush1.xpose.msra.mxu0 0.0
        %517 = vmatprep.subr.mxu0 0.0
        %518 = vmatpush1.xpose.msra.mxu0 0.0
        %519 = vmatprep.subr.mxu0 0.0
        %520 = vmatpush1.xpose.msra.mxu0 0.0
        %521 = vmatprep.subr.mxu0 0.0
        %522 = vmatpush1.xpose.msra.mxu0 0.0
        %523 = vmatprep.subr.mxu0 0.0
        %524 = vmatpush1.xpose.msra.mxu0 0.0
        %525 = vmatprep.subr.mxu0 0.0
        %526 = vmatpush1.xpose.msra.mxu0 0.0
        %527 = vmatprep.mubr.f32.mxu0 0.0
        %528 = vmatmul.mubr.f32.gmra.mrb[0].mxu0 %v459
        %v529 = vpop.f32.mrb[0].mxu0
        %v530 = vadd.f32 0.0, %v529
        %v531 = vpop.f32.mrb[0].mxu0
        %532 = vdwg.mxu0
        %v533 = vmul.f32 %v530, 0.35355338
        %v535 = vlaneseq
        %v536 = vshrl.u32 %v535, 7
        %v537 = vsub.s32 0, %v536
        %v538 = vrot.slane %v365, %v537
        %v540 = vadd.f32 %v533, %v538
        %v541 = vsel %vm458, %v540, -inf
        %542 = vmax.xlane.f32.xlu0 %v541
        %v543 = vpop.xlane.xlu0 %542
        %v544 = vsub.f32 %v540, %v543
        %v545 = vmul.f32 %v544, 1.442695
        %v546 = vpow.pop %v545
        %v547 = vsel %vm458, %v546, 0.0
        %548 = vadd.xlane.f32.xlu0 %v547
        %v549 = vpop.xlane.xlu0 %548
        %v550 = vrcp.pop %v549
        %v551 = vmul.f32 %v546, %v550
        %552 = vrot.lane.b32.xlu0 %v448, 64
        %v553 = vpop.permute.xlu0 %552
        %v556 = vsel %vm458, %v551, 0
        %558 = vmatprep.subr.mxu0 0.0
        %559 = vmatpush1.msra.mxu0 %v553
        %560 = vmatprep.subr.mxu0 0.0
        %561 = vmatpush1.msra.mxu0 0.0
        %562 = vmatprep.subr.mxu0 0.0
        %563 = vmatpush1.msra.mxu0 0.0
        %564 = vmatprep.subr.mxu0 0.0
        %565 = vmatpush1.msra.mxu0 0.0
        %566 = vmatprep.subr.mxu0 0.0
        %567 = vmatpush1.msra.mxu0 0.0
        %568 = vmatprep.subr.mxu0 0.0
        %569 = vmatpush1.msra.mxu0 0.0
        %570 = vmatprep.subr.mxu0 0.0
        %571 = vmatpush1.msra.mxu0 0.0
        %572 = vmatprep.subr.mxu0 0.0
        %573 = vmatpush1.msra.mxu0 0.0
        %574 = vmatprep.subr.mxu0 0.0
        %575 = vmatpush1.msra.mxu0 0.0
        %576 = vmatprep.subr.mxu0 0.0
        %577 = vmatpush1.msra.mxu0 0.0
        %578 = vmatprep.subr.mxu0 0.0
        %579 = vmatpush1.msra.mxu0 0.0
        %580 = vmatprep.subr.mxu0 0.0
        %581 = vmatpush1.msra.mxu0 0.0
        %582 = vmatprep.subr.mxu0 0.0
        %583 = vmatpush1.msra.mxu0 0.0
        %584 = vmatprep.subr.mxu0 0.0
        %585 = vmatpush1.msra.mxu0 0.0
        %586 = vmatprep.subr.mxu0 0.0
        %587 = vmatpush1.msra.mxu0 0.0
        %588 = vmatprep.subr.mxu0 0.0
        %589 = vmatpush1.msra.mxu0 0.0
        %590 = vmatprep.subr.mxu0 0.0
        %591 = vmatpush1.msra.mxu0 0.0
        %592 = vmatprep.subr.mxu0 0.0
        %593 = vmatpush1.msra.mxu0 0.0
        %594 = vmatprep.subr.mxu0 0.0
        %595 = vmatpush1.msra.mxu0 0.0
        %596 = vmatprep.subr.mxu0 0.0
        %597 = vmatpush1.msra.mxu0 0.0
        %598 = vmatprep.subr.mxu0 0.0
        %599 = vmatpush1.msra.mxu0 0.0
        %600 = vmatprep.subr.mxu0 0.0
        %601 = vmatpush1.msra.mxu0 0.0
        %602 = vmatprep.subr.mxu0 0.0
        %603 = vmatpush1.msra.mxu0 0.0
        %604 = vmatprep.subr.mxu0 0.0
        %605 = vmatpush1.msra.mxu0 0.0
        %606 = vmatprep.subr.mxu0 0.0
        %607 = vmatpush1.msra.mxu0 0.0
        %608 = vmatprep.subr.mxu0 0.0
        %609 = vmatpush1.msra.mxu0 0.0
        %610 = vmatprep.subr.mxu0 0.0
        %611 = vmatpush1.msra.mxu0 0.0
        %612 = vmatprep.subr.mxu0 0.0
        %613 = vmatpush1.msra.mxu0 0.0
        %614 = vmatprep.subr.mxu0 0.0
        %615 = vmatpush1.msra.mxu0 0.0
        %616 = vmatprep.subr.mxu0 0.0
        %617 = vmatpush1.msra.mxu0 0.0
        %618 = vmatprep.subr.mxu0 0.0
        %619 = vmatpush1.msra.mxu0 0.0
        %620 = vmatprep.subr.mxu0 0.0
        %621 = vmatpush1.msra.mxu0 0.0
        %622 = vmatprep.mubr.f32.mxu0 0.0
        %623 = vmatmul.mubr.f32.gmra.mrb[0].mxu0 %v556
        %v624 = vpop.f32.mrb[0].mxu0
        %v625 = vadd.f32 0.0, %v624
        %v626 = vpop.f32.mrb[0].mxu0
        %627 = vdwg.mxu0
        %628 = vrot.lane.b32.xlu0 %v448, 120
        %v629 = vpop.permute.xlu0 %628
        %630 = vrot.lane.b32.xlu0 %v448, 88
        %v631 = vpop.permute.xlu0 %630
        %v632 = vsel %vm458, %v629, 0
        %v634 = vsel %vm458, %v631, 0
        %636 = vmatprep.subr.mxu0 0.0
        %637 = vmatpush1.xpose.msra.mxu0 %v634
        %638 = vmatprep.subr.mxu0 0.0
        %639 = vmatpush1.xpose.msra.mxu0 0.0
        %640 = vmatprep.subr.mxu0 0.0
        %641 = vmatpush1.xpose.msra.mxu0 0.0
        %642 = vmatprep.subr.mxu0 0.0
        %643 = vmatpush1.xpose.msra.mxu0 0.0
        %644 = vmatprep.subr.mxu0 0.0
        %645 = vmatpush1.xpose.msra.mxu0 0.0
        %646 = vmatprep.subr.mxu0 0.0
        %647 = vmatpush1.xpose.msra.mxu0 0.0
        %648 = vmatprep.subr.mxu0 0.0
        %649 = vmatpush1.xpose.msra.mxu0 0.0
        %650 = vmatprep.subr.mxu0 0.0
        %651 = vmatpush1.xpose.msra.mxu0 0.0
        %652 = vmatprep.subr.mxu0 0.0
        %653 = vmatpush1.xpose.msra.mxu0 0.0
        %654 = vmatprep.subr.mxu0 0.0
        %655 = vmatpush1.xpose.msra.mxu0 0.0
        %656 = vmatprep.subr.mxu0 0.0
        %657 = vmatpush1.xpose.msra.mxu0 0.0
        %658 = vmatprep.subr.mxu0 0.0
        %659 = vmatpush1.xpose.msra.mxu0 0.0
        %660 = vmatprep.subr.mxu0 0.0
        %661 = vmatpush1.xpose.msra.mxu0 0.0
        %662 = vmatprep.subr.mxu0 0.0
        %663 = vmatpush1.xpose.msra.mxu0 0.0
        %664 = vmatprep.subr.mxu0 0.0
        %665 = vmatpush1.xpose.msra.mxu0 0.0
        %666 = vmatprep.subr.mxu0 0.0
        %667 = vmatpush1.xpose.msra.mxu0 0.0
        %668 = vmatprep.subr.mxu0 0.0
        %669 = vmatpush1.xpose.msra.mxu0 0.0
        %670 = vmatprep.subr.mxu0 0.0
        %671 = vmatpush1.xpose.msra.mxu0 0.0
        %672 = vmatprep.subr.mxu0 0.0
        %673 = vmatpush1.xpose.msra.mxu0 0.0
        %674 = vmatprep.subr.mxu0 0.0
        %675 = vmatpush1.xpose.msra.mxu0 0.0
        %676 = vmatprep.subr.mxu0 0.0
        %677 = vmatpush1.xpose.msra.mxu0 0.0
        %678 = vmatprep.subr.mxu0 0.0
        %679 = vmatpush1.xpose.msra.mxu0 0.0
        %680 = vmatprep.subr.mxu0 0.0
        %681 = vmatpush1.xpose.msra.mxu0 0.0
        %682 = vmatprep.subr.mxu0 0.0
        %683 = vmatpush1.xpose.msra.mxu0 0.0
        %684 = vmatprep.subr.mxu0 0.0
        %685 = vmatpush1.xpose.msra.mxu0 0.0
        %686 = vmatprep.subr.mxu0 0.0
        %687 = vmatpush1.xpose.msra.mxu0 0.0
        %688 = vmatprep.subr.mxu0 0.0
        %689 = vmatpush1.xpose.msra.mxu0 0.0
        %690 = vmatprep.subr.mxu0 0.0
        %691 = vmatpush1.xpose.msra.mxu0 0.0
        %692 = vmatprep.subr.mxu0 0.0
        %693 = vmatpush1.xpose.msra.mxu0 0.0
        %694 = vmatprep.subr.mxu0 0.0
        %695 = vmatpush1.xpose.msra.mxu0 0.0
        %696 = vmatprep.subr.mxu0 0.0
        %697 = vmatpush1.xpose.msra.mxu0 0.0
        %698 = vmatprep.subr.mxu0 0.0
        %699 = vmatpush1.xpose.msra.mxu0 0.0
        %700 = vmatprep.mubr.f32.mxu0 0.0
        %701 = vmatmul.mubr.f32.gmra.mrb[0].mxu0 %v632
        %v702 = vpop.f32.mrb[0].mxu0
        %v703 = vadd.f32 0.0, %v702
        %v704 = vpop.f32.mrb[0].mxu0
        %705 = vdwg.mxu0
        %v706 = vmul.f32 %v703, 0.35355338
        %v707 = vadd.f32 %v706, %v538
        %v708 = vsel %vm458, %v707, -inf
        %709 = vmax.xlane.f32.xlu0 %v708
        %v710 = vpop.xlane.xlu0 %709
        %v711 = vsub.f32 %v707, %v710
        %v712 = vmul.f32 %v711, 1.442695
        %v713 = vpow.pop %v712
        %v714 = vsel %vm458, %v713, 0.0
        %715 = vadd.xlane.f32.xlu0 %v714
        %v716 = vpop.xlane.xlu0 %715
        %v717 = vrcp.pop %v716
        %v718 = vmul.f32 %v713, %v717
        %719 = vrot.lane.b32.xlu0 %v448, 56
        %v720 = vpop.permute.xlu0 %719
        %v723 = vsel %vm458, %v718, 0
        %725 = vmatprep.subr.mxu0 0.0
        %726 = vmatpush1.msra.mxu0 %v720
        %727 = vmatprep.subr.mxu0 0.0
        %728 = vmatpush1.msra.mxu0 0.0
        %729 = vmatprep.subr.mxu0 0.0
        %730 = vmatpush1.msra.mxu0 0.0
        %731 = vmatprep.subr.mxu0 0.0
        %732 = vmatpush1.msra.mxu0 0.0
        %733 = vmatprep.subr.mxu0 0.0
        %734 = vmatpush1.msra.mxu0 0.0
        %735 = vmatprep.subr.mxu0 0.0
        %736 = vmatpush1.msra.mxu0 0.0
        %737 = vmatprep.subr.mxu0 0.0
        %738 = vmatpush1.msra.mxu0 0.0
        %739 = vmatprep.subr.mxu0 0.0
        %740 = vmatpush1.msra.mxu0 0.0
        %741 = vmatprep.subr.mxu0 0.0
        %742 = vmatpush1.msra.mxu0 0.0
        %743 = vmatprep.subr.mxu0 0.0
        %744 = vmatpush1.msra.mxu0 0.0
        %745 = vmatprep.subr.mxu0 0.0
        %746 = vmatpush1.msra.mxu0 0.0
        %747 = vmatprep.subr.mxu0 0.0
        %748 = vmatpush1.msra.mxu0 0.0
        %749 = vmatprep.subr.mxu0 0.0
        %750 = vmatpush1.msra.mxu0 0.0
        %751 = vmatprep.subr.mxu0 0.0
        %752 = vmatpush1.msra.mxu0 0.0
        %753 = vmatprep.subr.mxu0 0.0
        %754 = vmatpush1.msra.mxu0 0.0
        %755 = vmatprep.subr.mxu0 0.0
        %756 = vmatpush1.msra.mxu0 0.0
        %757 = vmatprep.subr.mxu0 0.0
        %758 = vmatpush1.msra.mxu0 0.0
        %759 = vmatprep.subr.mxu0 0.0
        %760 = vmatpush1.msra.mxu0 0.0
        %761 = vmatprep.subr.mxu0 0.0
        %762 = vmatpush1.msra.mxu0 0.0
        %763 = vmatprep.subr.mxu0 0.0
        %764 = vmatpush1.msra.mxu0 0.0
        %765 = vmatprep.subr.mxu0 0.0
        %766 = vmatpush1.msra.mxu0 0.0
        %767 = vmatprep.subr.mxu0 0.0
        %768 = vmatpush1.msra.mxu0 0.0
        %769 = vmatprep.subr.mxu0 0.0
        %770 = vmatpush1.msra.mxu0 0.0
        %771 = vmatprep.subr.mxu0 0.0
        %772 = vmatpush1.msra.mxu0 0.0
        %773 = vmatprep.subr.mxu0 0.0
        %774 = vmatpush1.msra.mxu0 0.0
        %775 = vmatprep.subr.mxu0 0.0
        %776 = vmatpush1.msra.mxu0 0.0
        %777 = vmatprep.subr.mxu0 0.0
        %778 = vmatpush1.msra.mxu0 0.0
        %779 = vmatprep.subr.mxu0 0.0
        %780 = vmatpush1.msra.mxu0 0.0
        %781 = vmatprep.subr.mxu0 0.0
        %782 = vmatpush1.msra.mxu0 0.0
        %783 = vmatprep.subr.mxu0 0.0
        %784 = vmatpush1.msra.mxu0 0.0
        %785 = vmatprep.subr.mxu0 0.0
        %786 = vmatpush1.msra.mxu0 0.0
        %787 = vmatprep.subr.mxu0 0.0
        %788 = vmatpush1.msra.mxu0 0.0
        %789 = vmatprep.mubr.f32.mxu0 0.0
        %790 = vmatmul.mubr.f32.gmra.mrb[0].mxu0 %v723
        %v791 = vpop.f32.mrb[0].mxu0
        %v792 = vadd.f32 0.0, %v791
        %v793 = vpop.f32.mrb[0].mxu0
        %794 = vdwg.mxu0
        %v796 = vsel %vm458, %v792, 0
        %798 = vmatprep.subr.mxu0 0.0
        %799 = vmatpush1.msra.mxu0 %v452
        %800 = vmatprep.subr.mxu0 0.0
        %801 = vmatpush1.msra.mxu0 0.0
        %802 = vmatprep.subr.mxu0 0.0
        %803 = vmatpush1.msra.mxu0 0.0
        %804 = vmatprep.subr.mxu0 0.0
        %805 = vmatpush1.msra.mxu0 0.0
        %806 = vmatprep.subr.mxu0 0.0
        %807 = vmatpush1.msra.mxu0 0.0
        %808 = vmatprep.subr.mxu0 0.0
        %809 = vmatpush1.msra.mxu0 0.0
        %810 = vmatprep.subr.mxu0 0.0
        %811 = vmatpush1.msra.mxu0 0.0
        %812 = vmatprep.subr.mxu0 0.0
        %813 = vmatpush1.msra.mxu0 0.0
        %814 = vmatprep.subr.mxu0 0.0
        %815 = vmatpush1.msra.mxu0 0.0
        %816 = vmatprep.subr.mxu0 0.0
        %817 = vmatpush1.msra.mxu0 0.0
        %818 = vmatprep.subr.mxu0 0.0
        %819 = vmatpush1.msra.mxu0 0.0
        %820 = vmatprep.subr.mxu0 0.0
        %821 = vmatpush1.msra.mxu0 0.0
        %822 = vmatprep.subr.mxu0 0.0
        %823 = vmatpush1.msra.mxu0 0.0
        %824 = vmatprep.subr.mxu0 0.0
        %825 = vmatpush1.msra.mxu0 0.0
        %826 = vmatprep.subr.mxu0 0.0
        %827 = vmatpush1.msra.mxu0 0.0
        %828 = vmatprep.subr.mxu0 0.0
        %829 = vmatpush1.msra.mxu0 0.0
        %830 = vmatprep.subr.mxu0 0.0
        %831 = vmatpush1.msra.mxu0 0.0
        %832 = vmatprep.subr.mxu0 0.0
        %833 = vmatpush1.msra.mxu0 0.0
        %834 = vmatprep.subr.mxu0 0.0
        %835 = vmatpush1.msra.mxu0 0.0
        %836 = vmatprep.subr.mxu0 0.0
        %837 = vmatpush1.msra.mxu0 0.0
        %838 = vmatprep.subr.mxu0 0.0
        %839 = vmatpush1.msra.mxu0 0.0
        %840 = vmatprep.subr.mxu0 0.0
        %841 = vmatpush1.msra.mxu0 0.0
        %842 = vmatprep.subr.mxu0 0.0
        %843 = vmatpush1.msra.mxu0 0.0
        %844 = vmatprep.subr.mxu0 0.0
        %845 = vmatpush1.msra.mxu0 0.0
        %846 = vmatprep.subr.mxu0 0.0
        %847 = vmatpush1.msra.mxu0 0.0
        %848 = vmatprep.subr.mxu0 0.0
        %849 = vmatpush1.msra.mxu0 0.0
        %850 = vmatprep.subr.mxu0 0.0
        %851 = vmatpush1.msra.mxu0 0.0
        %852 = vmatprep.subr.mxu0 0.0
        %853 = vmatpush1.msra.mxu0 0.0
        %854 = vmatprep.subr.mxu0 0.0
        %855 = vmatpush1.msra.mxu0 0.0
        %856 = vmatprep.subr.mxu0 0.0
        %857 = vmatpush1.msra.mxu0 0.0
        %858 = vmatprep.subr.mxu0 0.0
        %859 = vmatpush1.msra.mxu0 0.0
        %860 = vmatprep.subr.mxu0 0.0
        %861 = vmatpush1.msra.mxu0 0.0
        %862 = vmatprep.mubr.f32.mxu0 0.0
        %863 = vmatmul.mubr.f32.gmra.mrb[0].mxu0 %v796
        %v864 = vpop.f32.mrb[0].mxu0
        %v865 = vadd.f32 0.0, %v864
        %v866 = vpop.f32.mrb[0].mxu0
        %867 = vdwg.mxu0
        %v869 = vsel %vm458, %v625, 0
        %871 = vmatprep.subr.mxu0 0.0
        %872 = vmatpush1.msra.mxu0 %v451
        %873 = vmatprep.subr.mxu0 0.0
        %874 = vmatpush1.msra.mxu0 0.0
        %875 = vmatprep.subr.mxu0 0.0
        %876 = vmatpush1.msra.mxu0 0.0
        %877 = vmatprep.subr.mxu0 0.0
        %878 = vmatpush1.msra.mxu0 0.0
        %879 = vmatprep.subr.mxu0 0.0
        %880 = vmatpush1.msra.mxu0 0.0
        %881 = vmatprep.subr.mxu0 0.0
        %882 = vmatpush1.msra.mxu0 0.0
        %883 = vmatprep.subr.mxu0 0.0
        %884 = vmatpush1.msra.mxu0 0.0
        %885 = vmatprep.subr.mxu0 0.0
        %886 = vmatpush1.msra.mxu0 0.0
        %887 = vmatprep.subr.mxu0 0.0
        %888 = vmatpush1.msra.mxu0 0.0
        %889 = vmatprep.subr.mxu0 0.0
        %890 = vmatpush1.msra.mxu0 0.0
        %891 = vmatprep.subr.mxu0 0.0
        %892 = vmatpush1.msra.mxu0 0.0
        %893 = vmatprep.subr.mxu0 0.0
        %894 = vmatpush1.msra.mxu0 0.0
        %895 = vmatprep.subr.mxu0 0.0
        %896 = vmatpush1.msra.mxu0 0.0
        %897 = vmatprep.subr.mxu0 0.0
        %898 = vmatpush1.msra.mxu0 0.0
        %899 = vmatprep.subr.mxu0 0.0
        %900 = vmatpush1.msra.mxu0 0.0
        %901 = vmatprep.subr.mxu0 0.0
        %902 = vmatpush1.msra.mxu0 0.0
        %903 = vmatprep.subr.mxu0 0.0
        %904 = vmatpush1.msra.mxu0 0.0
        %905 = vmatprep.subr.mxu0 0.0
        %906 = vmatpush1.msra.mxu0 0.0
        %907 = vmatprep.subr.mxu0 0.0
        %908 = vmatpush1.msra.mxu0 0.0
        %909 = vmatprep.subr.mxu0 0.0
        %910 = vmatpush1.msra.mxu0 0.0
        %911 = vmatprep.subr.mxu0 0.0
        %912 = vmatpush1.msra.mxu0 0.0
        %913 = vmatprep.subr.mxu0 0.0
        %914 = vmatpush1.msra.mxu0 0.0
        %915 = vmatprep.subr.mxu0 0.0
        %916 = vmatpush1.msra.mxu0 0.0
        %917 = vmatprep.subr.mxu0 0.0
        %918 = vmatpush1.msra.mxu0 0.0
        %919 = vmatprep.subr.mxu0 0.0
        %920 = vmatpush1.msra.mxu0 0.0
        %921 = vmatprep.subr.mxu0 0.0
        %922 = vmatpush1.msra.mxu0 0.0
        %923 = vmatprep.subr.mxu0 0.0
        %924 = vmatpush1.msra.mxu0 0.0
        %925 = vmatprep.subr.mxu0 0.0
        %926 = vmatpush1.msra.mxu0 0.0
        %927 = vmatprep.subr.mxu0 0.0
        %928 = vmatpush1.msra.mxu0 0.0
        %929 = vmatprep.subr.mxu0 0.0
        %930 = vmatpush1.msra.mxu0 0.0
        %931 = vmatprep.subr.mxu0 0.0
        %932 = vmatpush1.msra.mxu0 0.0
        %933 = vmatprep.subr.mxu0 0.0
        %934 = vmatpush1.msra.mxu0 0.0
        %935 = vmatprep.mubr.f32.mxu0 0.0
        %936 = vmatmul.mubr.f32.gmra.mrb[0].mxu0 %v869
        %v937 = vpop.f32.mrb[0].mxu0
        %v938 = vadd.f32 %v865, %v937
        %v939 = vpop.f32.mrb[0].mxu0
        %940 = vdwg.mxu0
        %941 = vrot.lane.b32.xlu0 %v448, 112
        %v942 = vpop.permute.xlu0 %941
        %943 = vrot.lane.b32.xlu0 %v448, 80
        %v944 = vpop.permute.xlu0 %943
        %v945 = vsel %vm458, %v942, 0
        %v947 = vsel %vm458, %v944, 0
        %949 = vmatprep.subr.mxu0 0.0
        %950 = vmatpush1.xpose.msra.mxu0 %v947
        %951 = vmatprep.subr.mxu0 0.0
        %952 = vmatpush1.xpose.msra.mxu0 0.0
        %953 = vmatprep.subr.mxu0 0.0
        %954 = vmatpush1.xpose.msra.mxu0 0.0
        %955 = vmatprep.subr.mxu0 0.0
        %956 = vmatpush1.xpose.msra.mxu0 0.0
        %957 = vmatprep.subr.mxu0 0.0
        %958 = vmatpush1.xpose.msra.mxu0 0.0
        %959 = vmatprep.subr.mxu0 0.0
        %960 = vmatpush1.xpose.msra.mxu0 0.0
        %961 = vmatprep.subr.mxu0 0.0
        %962 = vmatpush1.xpose.msra.mxu0 0.0
        %963 = vmatprep.subr.mxu0 0.0
        %964 = vmatpush1.xpose.msra.mxu0 0.0
        %965 = vmatprep.subr.mxu0 0.0
        %966 = vmatpush1.xpose.msra.mxu0 0.0
        %967 = vmatprep.subr.mxu0 0.0
        %968 = vmatpush1.xpose.msra.mxu0 0.0
        %969 = vmatprep.subr.mxu0 0.0
        %970 = vmatpush1.xpose.msra.mxu0 0.0
        %971 = vmatprep.subr.mxu0 0.0
        %972 = vmatpush1.xpose.msra.mxu0 0.0
        %973 = vmatprep.subr.mxu0 0.0
        %974 = vmatpush1.xpose.msra.mxu0 0.0
        %975 = vmatprep.subr.mxu0 0.0
        %976 = vmatpush1.xpose.msra.mxu0 0.0
        %977 = vmatprep.subr.mxu0 0.0
        %978 = vmatpush1.xpose.msra.mxu0 0.0
        %979 = vmatprep.subr.mxu0 0.0
        %980 = vmatpush1.xpose.msra.mxu0 0.0
        %981 = vmatprep.subr.mxu0 0.0
        %982 = vmatpush1.xpose.msra.mxu0 0.0
        %983 = vmatprep.subr.mxu0 0.0
        %984 = vmatpush1.xpose.msra.mxu0 0.0
        %985 = vmatprep.subr.mxu0 0.0
        %986 = vmatpush1.xpose.msra.mxu0 0.0
        %987 = vmatprep.subr.mxu0 0.0
        %988 = vmatpush1.xpose.msra.mxu0 0.0
        %989 = vmatprep.subr.mxu0 0.0
        %990 = vmatpush1.xpose.msra.mxu0 0.0
        %991 = vmatprep.subr.mxu0 0.0
        %992 = vmatpush1.xpose.msra.mxu0 0.0
        %993 = vmatprep.subr.mxu0 0.0
        %994 = vmatpush1.xpose.msra.mxu0 0.0
        %995 = vmatprep.subr.mxu0 0.0
        %996 = vmatpush1.xpose.msra.mxu0 0.0
        %997 = vmatprep.subr.mxu0 0.0
        %998 = vmatpush1.xpose.msra.mxu0 0.0
        %999 = vmatprep.subr.mxu0 0.0
        %1000 = vmatpush1.xpose.msra.mxu0 0.0
        %1001 = vmatprep.subr.mxu0 0.0
        %1002 = vmatpush1.xpose.msra.mxu0 0.0
        %1003 = vmatprep.subr.mxu0 0.0
        %1004 = vmatpush1.xpose.msra.mxu0 0.0
        %1005 = vmatprep.subr.mxu0 0.0
        %1006 = vmatpush1.xpose.msra.mxu0 0.0
        %1007 = vmatprep.subr.mxu0 0.0
        %1008 = vmatpush1.xpose.msra.mxu0 0.0
        %1009 = vmatprep.subr.mxu0 0.0
        %1010 = vmatpush1.xpose.msra.mxu0 0.0
        %1011 = vmatprep.subr.mxu0 0.0
        %1012 = vmatpush1.xpose.msra.mxu0 0.0
        %1013 = vmatprep.mubr.f32.mxu0 0.0
        %1014 = vmatmul.mubr.f32.gmra.mrb[0].mxu0 %v945
        %v1015 = vpop.f32.mrb[0].mxu0
        %v1016 = vadd.f32 0.0, %v1015
        %v1017 = vpop.f32.mrb[0].mxu0
        %1018 = vdwg.mxu0
        %v1019 = vmul.f32 %v1016, 0.35355338
        %v1020 = vadd.f32 %v1019, %v538
        %v1021 = vsel %vm458, %v1020, -inf
        %1022 = vmax.xlane.f32.xlu0 %v1021
        %v1023 = vpop.xlane.xlu0 %1022
        %v1024 = vsub.f32 %v1020, %v1023
        %v1025 = vmul.f32 %v1024, 1.442695
        %v1026 = vpow.pop %v1025
        %v1027 = vsel %vm458, %v1026, 0.0
        %1028 = vadd.xlane.f32.xlu0 %v1027
        %v1029 = vpop.xlane.xlu0 %1028
        %v1030 = vrcp.pop %v1029
        %v1031 = vmul.f32 %v1026, %v1030
        %1032 = vrot.lane.b32.xlu0 %v448, 48
        %v1033 = vpop.permute.xlu0 %1032
        %v1036 = vsel %vm458, %v1031, 0
        %1038 = vmatprep.subr.mxu0 0.0
        %1039 = vmatpush1.msra.mxu0 %v1033
        %1040 = vmatprep.subr.mxu0 0.0
        %1041 = vmatpush1.msra.mxu0 0.0
        %1042 = vmatprep.subr.mxu0 0.0
        %1043 = vmatpush1.msra.mxu0 0.0
        %1044 = vmatprep.subr.mxu0 0.0
        %1045 = vmatpush1.msra.mxu0 0.0
        %1046 = vmatprep.subr.mxu0 0.0
        %1047 = vmatpush1.msra.mxu0 0.0
        %1048 = vmatprep.subr.mxu0 0.0
        %1049 = vmatpush1.msra.mxu0 0.0
        %1050 = vmatprep.subr.mxu0 0.0
        %1051 = vmatpush1.msra.mxu0 0.0
        %1052 = vmatprep.subr.mxu0 0.0
        %1053 = vmatpush1.msra.mxu0 0.0
        %1054 = vmatprep.subr.mxu0 0.0
        %1055 = vmatpush1.msra.mxu0 0.0
        %1056 = vmatprep.subr.mxu0 0.0
        %1057 = vmatpush1.msra.mxu0 0.0
        %1058 = vmatprep.subr.mxu0 0.0
        %1059 = vmatpush1.msra.mxu0 0.0
        %1060 = vmatprep.subr.mxu0 0.0
        %1061 = vmatpush1.msra.mxu0 0.0
        %1062 = vmatprep.subr.mxu0 0.0
        %1063 = vmatpush1.msra.mxu0 0.0
        %1064 = vmatprep.subr.mxu0 0.0
        %1065 = vmatpush1.msra.mxu0 0.0
        %1066 = vmatprep.subr.mxu0 0.0
        %1067 = vmatpush1.msra.mxu0 0.0
        %1068 = vmatprep.subr.mxu0 0.0
        %1069 = vmatpush1.msra.mxu0 0.0
        %1070 = vmatprep.subr.mxu0 0.0
        %1071 = vmatpush1.msra.mxu0 0.0
        %1072 = vmatprep.subr.mxu0 0.0
        %1073 = vmatpush1.msra.mxu0 0.0
        %1074 = vmatprep.subr.mxu0 0.0
        %1075 = vmatpush1.msra.mxu0 0.0
        %1076 = vmatprep.subr.mxu0 0.0
        %1077 = vmatpush1.msra.mxu0 0.0
        %1078 = vmatprep.subr.mxu0 0.0
        %1079 = vmatpush1.msra.mxu0 0.0
        %1080 = vmatprep.subr.mxu0 0.0
        %1081 = vmatpush1.msra.mxu0 0.0
        %1082 = vmatprep.subr.mxu0 0.0
        %1083 = vmatpush1.msra.mxu0 0.0
        %1084 = vmatprep.subr.mxu0 0.0
        %1085 = vmatpush1.msra.mxu0 0.0
        %1086 = vmatprep.subr.mxu0 0.0
        %1087 = vmatpush1.msra.mxu0 0.0
        %1088 = vmatprep.subr.mxu0 0.0
        %1089 = vmatpush1.msra.mxu0 0.0
        %1090 = vmatprep.subr.mxu0 0.0
        %1091 = vmatpush1.msra.mxu0 0.0
        %1092 = vmatprep.subr.mxu0 0.0
        %1093 = vmatpush1.msra.mxu0 0.0
        %1094 = vmatprep.subr.mxu0 0.0
        %1095 = vmatpush1.msra.mxu0 0.0
        %1096 = vmatprep.subr.mxu0 0.0
        %1097 = vmatpush1.msra.mxu0 0.0
        %1098 = vmatprep.subr.mxu0 0.0
        %1099 = vmatpush1.msra.mxu0 0.0
        %1100 = vmatprep.subr.mxu0 0.0
        %1101 = vmatpush1.msra.mxu0 0.0
        %1102 = vmatprep.mubr.f32.mxu0 0.0
        %1103 = vmatmul.mubr.f32.gmra.mrb[0].mxu0 %v1036
        %v1104 = vpop.f32.mrb[0].mxu0
        %v1105 = vadd.f32 0.0, %v1104
        %v1106 = vpop.f32.mrb[0].mxu0
        %1107 = vdwg.mxu0
        %v1109 = vsel %vm458, %v1105, 0
        %1111 = vmatprep.subr.mxu0 0.0
        %1112 = vmatpush1.msra.mxu0 %v453
        %1113 = vmatprep.subr.mxu0 0.0
        %1114 = vmatpush1.msra.mxu0 0.0
        %1115 = vmatprep.subr.mxu0 0.0
        %1116 = vmatpush1.msra.mxu0 0.0
        %1117 = vmatprep.subr.mxu0 0.0
        %1118 = vmatpush1.msra.mxu0 0.0
        %1119 = vmatprep.subr.mxu0 0.0
        %1120 = vmatpush1.msra.mxu0 0.0
        %1121 = vmatprep.subr.mxu0 0.0
        %1122 = vmatpush1.msra.mxu0 0.0
        %1123 = vmatprep.subr.mxu0 0.0
        %1124 = vmatpush1.msra.mxu0 0.0
        %1125 = vmatprep.subr.mxu0 0.0
        %1126 = vmatpush1.msra.mxu0 0.0
        %1127 = vmatprep.subr.mxu0 0.0
        %1128 = vmatpush1.msra.mxu0 0.0
        %1129 = vmatprep.subr.mxu0 0.0
        %1130 = vmatpush1.msra.mxu0 0.0
        %1131 = vmatprep.subr.mxu0 0.0
        %1132 = vmatpush1.msra.mxu0 0.0
        %1133 = vmatprep.subr.mxu0 0.0
        %1134 = vmatpush1.msra.mxu0 0.0
        %1135 = vmatprep.subr.mxu0 0.0
        %1136 = vmatpush1.msra.mxu0 0.0
        %1137 = vmatprep.subr.mxu0 0.0
        %1138 = vmatpush1.msra.mxu0 0.0
        %1139 = vmatprep.subr.mxu0 0.0
        %1140 = vmatpush1.msra.mxu0 0.0
        %1141 = vmatprep.subr.mxu0 0.0
        %1142 = vmatpush1.msra.mxu0 0.0
        %1143 = vmatprep.subr.mxu0 0.0
        %1144 = vmatpush1.msra.mxu0 0.0
        %1145 = vmatprep.subr.mxu0 0.0
        %1146 = vmatpush1.msra.mxu0 0.0
        %1147 = vmatprep.subr.mxu0 0.0
        %1148 = vmatpush1.msra.mxu0 0.0
        %1149 = vmatprep.subr.mxu0 0.0
        %1150 = vmatpush1.msra.mxu0 0.0
        %1151 = vmatprep.subr.mxu0 0.0
        %1152 = vmatpush1.msra.mxu0 0.0
        %1153 = vmatprep.subr.mxu0 0.0
        %1154 = vmatpush1.msra.mxu0 0.0
        %1155 = vmatprep.subr.mxu0 0.0
        %1156 = vmatpush1.msra.mxu0 0.0
        %1157 = vmatprep.subr.mxu0 0.0
        %1158 = vmatpush1.msra.mxu0 0.0
        %1159 = vmatprep.subr.mxu0 0.0
        %1160 = vmatpush1.msra.mxu0 0.0
        %1161 = vmatprep.subr.mxu0 0.0
        %1162 = vmatpush1.msra.mxu0 0.0
        %1163 = vmatprep.subr.mxu0 0.0
        %1164 = vmatpush1.msra.mxu0 0.0
        %1165 = vmatprep.subr.mxu0 0.0
        %1166 = vmatpush1.msra.mxu0 0.0
        %1167 = vmatprep.subr.mxu0 0.0
        %1168 = vmatpush1.msra.mxu0 0.0
        %1169 = vmatprep.subr.mxu0 0.0
        %1170 = vmatpush1.msra.mxu0 0.0
        %1171 = vmatprep.subr.mxu0 0.0
        %1172 = vmatpush1.msra.mxu0 0.0
        %1173 = vmatprep.subr.mxu0 0.0
        %1174 = vmatpush1.msra.mxu0 0.0
        %1175 = vmatprep.mubr.f32.mxu0 0.0
        %1176 = vmatmul.mubr.f32.gmra.mrb[0].mxu0 %v1109
        %v1177 = vpop.f32.mrb[0].mxu0
        %v1178 = vadd.f32 0.0, %v1177
        %v1179 = vpop.f32.mrb[0].mxu0
        %1180 = vdwg.mxu0
        %v1181 = vadd.f32 %v938, %v1178
        %1182 = vrot.lane.b32.xlu0 %v448, 104
        %v1183 = vpop.permute.xlu0 %1182
        %1184 = vrot.lane.b32.xlu0 %v448, 72
        %v1185 = vpop.permute.xlu0 %1184
        %v1186 = vsel %vm458, %v1183, 0
        %v1188 = vsel %vm458, %v1185, 0
        %1190 = vmatprep.subr.mxu0 0.0
        %1191 = vmatpush1.xpose.msra.mxu0 %v1188
        %1192 = vmatprep.subr.mxu0 0.0
        %1193 = vmatpush1.xpose.msra.mxu0 0.0
        %1194 = vmatprep.subr.mxu0 0.0
        %1195 = vmatpush1.xpose.msra.mxu0 0.0
        %1196 = vmatprep.subr.mxu0 0.0
        %1197 = vmatpush1.xpose.msra.mxu0 0.0
        %1198 = vmatprep.subr.mxu0 0.0
        %1199 = vmatpush1.xpose.msra.mxu0 0.0
        %1200 = vmatprep.subr.mxu0 0.0
        %1201 = vmatpush1.xpose.msra.mxu0 0.0
        %1202 = vmatprep.subr.mxu0 0.0
        %1203 = vmatpush1.xpose.msra.mxu0 0.0
        %1204 = vmatprep.subr.mxu0 0.0
        %1205 = vmatpush1.xpose.msra.mxu0 0.0
        %1206 = vmatprep.subr.mxu0 0.0
        %1207 = vmatpush1.xpose.msra.mxu0 0.0
        %1208 = vmatprep.subr.mxu0 0.0
        %1209 = vmatpush1.xpose.msra.mxu0 0.0
        %1210 = vmatprep.subr.mxu0 0.0
        %1211 = vmatpush1.xpose.msra.mxu0 0.0
        %1212 = vmatprep.subr.mxu0 0.0
        %1213 = vmatpush1.xpose.msra.mxu0 0.0
        %1214 = vmatprep.subr.mxu0 0.0
        %1215 = vmatpush1.xpose.msra.mxu0 0.0
        %1216 = vmatprep.subr.mxu0 0.0
        %1217 = vmatpush1.xpose.msra.mxu0 0.0
        %1218 = vmatprep.subr.mxu0 0.0
        %1219 = vmatpush1.xpose.msra.mxu0 0.0
        %1220 = vmatprep.subr.mxu0 0.0
        %1221 = vmatpush1.xpose.msra.mxu0 0.0
        %1222 = vmatprep.subr.mxu0 0.0
        %1223 = vmatpush1.xpose.msra.mxu0 0.0
        %1224 = vmatprep.subr.mxu0 0.0
        %1225 = vmatpush1.xpose.msra.mxu0 0.0
        %1226 = vmatprep.subr.mxu0 0.0
        %1227 = vmatpush1.xpose.msra.mxu0 0.0
        %1228 = vmatprep.subr.mxu0 0.0
        %1229 = vmatpush1.xpose.msra.mxu0 0.0
        %1230 = vmatprep.subr.mxu0 0.0
        %1231 = vmatpush1.xpose.msra.mxu0 0.0
        %1232 = vmatprep.subr.mxu0 0.0
        %1233 = vmatpush1.xpose.msra.mxu0 0.0
        %1234 = vmatprep.subr.mxu0 0.0
        %1235 = vmatpush1.xpose.msra.mxu0 0.0
        %1236 = vmatprep.subr.mxu0 0.0
        %1237 = vmatpush1.xpose.msra.mxu0 0.0
        %1238 = vmatprep.subr.mxu0 0.0
        %1239 = vmatpush1.xpose.msra.mxu0 0.0
        %1240 = vmatprep.subr.mxu0 0.0
        %1241 = vmatpush1.xpose.msra.mxu0 0.0
        %1242 = vmatprep.subr.mxu0 0.0
        %1243 = vmatpush1.xpose.msra.mxu0 0.0
        %1244 = vmatprep.subr.mxu0 0.0
        %1245 = vmatpush1.xpose.msra.mxu0 0.0
        %1246 = vmatprep.subr.mxu0 0.0
        %1247 = vmatpush1.xpose.msra.mxu0 0.0
        %1248 = vmatprep.subr.mxu0 0.0
        %1249 = vmatpush1.xpose.msra.mxu0 0.0
        %1250 = vmatprep.subr.mxu0 0.0
        %1251 = vmatpush1.xpose.msra.mxu0 0.0
        %1252 = vmatprep.subr.mxu0 0.0
        %1253 = vmatpush1.xpose.msra.mxu0 0.0
        %1254 = vmatprep.mubr.f32.mxu0 0.0
        %1255 = vmatmul.mubr.f32.gmra.mrb[0].mxu0 %v1186
        %v1256 = vpop.f32.mrb[0].mxu0
        %v1257 = vadd.f32 0.0, %v1256
        %v1258 = vpop.f32.mrb[0].mxu0
        %1259 = vdwg.mxu0
        %v1260 = vmul.f32 %v1257, 0.35355338
        %v1261 = vadd.f32 %v1260, %v538
        %v1262 = vsel %vm458, %v1261, -inf
        %1263 = vmax.xlane.f32.xlu0 %v1262
        %v1264 = vpop.xlane.xlu0 %1263
        %v1265 = vsub.f32 %v1261, %v1264
        %v1266 = vmul.f32 %v1265, 1.442695
        %v1267 = vpow.pop %v1266
        %v1268 = vsel %vm458, %v1267, 0.0
        %1269 = vadd.xlane.f32.xlu0 %v1268
        %v1270 = vpop.xlane.xlu0 %1269
        %v1271 = vrcp.pop %v1270
        %v1272 = vmul.f32 %v1267, %v1271
        %1273 = vrot.lane.b32.xlu0 %v448, 40
        %v1274 = vpop.permute.xlu0 %1273
        %v1277 = vsel %vm458, %v1272, 0
        %1279 = vmatprep.subr.mxu0 0.0
        %1280 = vmatpush1.msra.mxu0 %v1274
        %1281 = vmatprep.subr.mxu0 0.0
        %1282 = vmatpush1.msra.mxu0 0.0
        %1283 = vmatprep.subr.mxu0 0.0
        %1284 = vmatpush1.msra.mxu0 0.0
        %1285 = vmatprep.subr.mxu0 0.0
        %1286 = vmatpush1.msra.mxu0 0.0
        %1287 = vmatprep.subr.mxu0 0.0
        %1288 = vmatpush1.msra.mxu0 0.0
        %1289 = vmatprep.subr.mxu0 0.0
        %1290 = vmatpush1.msra.mxu0 0.0
        %1291 = vmatprep.subr.mxu0 0.0
        %1292 = vmatpush1.msra.mxu0 0.0
        %1293 = vmatprep.subr.mxu0 0.0
        %1294 = vmatpush1.msra.mxu0 0.0
        %1295 = vmatprep.subr.mxu0 0.0
        %1296 = vmatpush1.msra.mxu0 0.0
        %1297 = vmatprep.subr.mxu0 0.0
        %1298 = vmatpush1.msra.mxu0 0.0
        %1299 = vmatprep.subr.mxu0 0.0
        %1300 = vmatpush1.msra.mxu0 0.0
        %1301 = vmatprep.subr.mxu0 0.0
        %1302 = vmatpush1.msra.mxu0 0.0
        %1303 = vmatprep.subr.mxu0 0.0
        %1304 = vmatpush1.msra.mxu0 0.0
        %1305 = vmatprep.subr.mxu0 0.0
        %1306 = vmatpush1.msra.mxu0 0.0
        %1307 = vmatprep.subr.mxu0 0.0
        %1308 = vmatpush1.msra.mxu0 0.0
        %1309 = vmatprep.subr.mxu0 0.0
        %1310 = vmatpush1.msra.mxu0 0.0
        %1311 = vmatprep.subr.mxu0 0.0
        %1312 = vmatpush1.msra.mxu0 0.0
        %1313 = vmatprep.subr.mxu0 0.0
        %1314 = vmatpush1.msra.mxu0 0.0
        %1315 = vmatprep.subr.mxu0 0.0
        %1316 = vmatpush1.msra.mxu0 0.0
        %1317 = vmatprep.subr.mxu0 0.0
        %1318 = vmatpush1.msra.mxu0 0.0
        %1319 = vmatprep.subr.mxu0 0.0
        %1320 = vmatpush1.msra.mxu0 0.0
        %1321 = vmatprep.subr.mxu0 0.0
        %1322 = vmatpush1.msra.mxu0 0.0
        %1323 = vmatprep.subr.mxu0 0.0
        %1324 = vmatpush1.msra.mxu0 0.0
        %1325 = vmatprep.subr.mxu0 0.0
        %1326 = vmatpush1.msra.mxu0 0.0
        %1327 = vmatprep.subr.mxu0 0.0
        %1328 = vmatpush1.msra.mxu0 0.0
        %1329 = vmatprep.subr.mxu0 0.0
        %1330 = vmatpush1.msra.mxu0 0.0
        %1331 = vmatprep.subr.mxu0 0.0
        %1332 = vmatpush1.msra.mxu0 0.0
        %1333 = vmatprep.subr.mxu0 0.0
        %1334 = vmatpush1.msra.mxu0 0.0
        %1335 = vmatprep.subr.mxu0 0.0
        %1336 = vmatpush1.msra.mxu0 0.0
        %1337 = vmatprep.subr.mxu0 0.0
        %1338 = vmatpush1.msra.mxu0 0.0
        %1339 = vmatprep.subr.mxu0 0.0
        %1340 = vmatpush1.msra.mxu0 0.0
        %1341 = vmatprep.subr.mxu0 0.0
        %1342 = vmatpush1.msra.mxu0 0.0
        %1343 = vmatprep.mubr.f32.mxu0 0.0
        %1344 = vmatmul.mubr.f32.gmra.mrb[0].mxu0 %v1277
        %v1345 = vpop.f32.mrb[0].mxu0
        %v1346 = vadd.f32 0.0, %v1345
        %v1347 = vpop.f32.mrb[0].mxu0
        %1348 = vdwg.mxu0
        %v1350 = vsel %vm458, %v1346, 0
        %1352 = vmatprep.subr.mxu0 0.0
        %1353 = vmatpush1.msra.mxu0 %v454
        %1354 = vmatprep.subr.mxu0 0.0
        %1355 = vmatpush1.msra.mxu0 0.0
        %1356 = vmatprep.subr.mxu0 0.0
        %1357 = vmatpush1.msra.mxu0 0.0
        %1358 = vmatprep.subr.mxu0 0.0
        %1359 = vmatpush1.msra.mxu0 0.0
        %1360 = vmatprep.subr.mxu0 0.0
        %1361 = vmatpush1.msra.mxu0 0.0
        %1362 = vmatprep.subr.mxu0 0.0
        %1363 = vmatpush1.msra.mxu0 0.0
        %1364 = vmatprep.subr.mxu0 0.0
        %1365 = vmatpush1.msra.mxu0 0.0
        %1366 = vmatprep.subr.mxu0 0.0
        %1367 = vmatpush1.msra.mxu0 0.0
        %1368 = vmatprep.subr.mxu0 0.0
        %1369 = vmatpush1.msra.mxu0 0.0
        %1370 = vmatprep.subr.mxu0 0.0
        %1371 = vmatpush1.msra.mxu0 0.0
        %1372 = vmatprep.subr.mxu0 0.0
        %1373 = vmatpush1.msra.mxu0 0.0
        %1374 = vmatprep.subr.mxu0 0.0
        %1375 = vmatpush1.msra.mxu0 0.0
        %1376 = vmatprep.subr.mxu0 0.0
        %1377 = vmatpush1.msra.mxu0 0.0
        %1378 = vmatprep.subr.mxu0 0.0
        %1379 = vmatpush1.msra.mxu0 0.0
        %1380 = vmatprep.subr.mxu0 0.0
        %1381 = vmatpush1.msra.mxu0 0.0
        %1382 = vmatprep.subr.mxu0 0.0
        %1383 = vmatpush1.msra.mxu0 0.0
        %1384 = vmatprep.subr.mxu0 0.0
        %1385 = vmatpush1.msra.mxu0 0.0
        %1386 = vmatprep.subr.mxu0 0.0
        %1387 = vmatpush1.msra.mxu0 0.0
        %1388 = vmatprep.subr.mxu0 0.0
        %1389 = vmatpush1.msra.mxu0 0.0
        %1390 = vmatprep.subr.mxu0 0.0
        %1391 = vmatpush1.msra.mxu0 0.0
        %1392 = vmatprep.subr.mxu0 0.0
        %1393 = vmatpush1.msra.mxu0 0.0
        %1394 = vmatprep.subr.mxu0 0.0
        %1395 = vmatpush1.msra.mxu0 0.0
        %1396 = vmatprep.subr.mxu0 0.0
        %1397 = vmatpush1.msra.mxu0 0.0
        %1398 = vmatprep.subr.mxu0 0.0
        %1399 = vmatpush1.msra.mxu0 0.0
        %1400 = vmatprep.subr.mxu0 0.0
        %1401 = vmatpush1.msra.mxu0 0.0
        %1402 = vmatprep.subr.mxu0 0.0
        %1403 = vmatpush1.msra.mxu0 0.0
        %1404 = vmatprep.subr.mxu0 0.0
        %1405 = vmatpush1.msra.mxu0 0.0
        %1406 = vmatprep.subr.mxu0 0.0
        %1407 = vmatpush1.msra.mxu0 0.0
        %1408 = vmatprep.subr.mxu0 0.0
        %1409 = vmatpush1.msra.mxu0 0.0
        %1410 = vmatprep.subr.mxu0 0.0
        %1411 = vmatpush1.msra.mxu0 0.0
        %1412 = vmatprep.subr.mxu0 0.0
        %1413 = vmatpush1.msra.mxu0 0.0
        %1414 = vmatprep.subr.mxu0 0.0
        %1415 = vmatpush1.msra.mxu0 0.0
        %1416 = vmatprep.mubr.f32.mxu0 0.0
        %1417 = vmatmul.mubr.f32.gmra.mrb[0].mxu0 %v1350
        %v1418 = vpop.f32.mrb[0].mxu0
        %v1419 = vadd.f32 0.0, %v1418
        %v1420 = vpop.f32.mrb[0].mxu0
        %1421 = vdwg.mxu0
        %v1422 = vadd.f32 %v1181, %v1419
        %v1423 = vld [vmem:[%s5] sm:$0x1]
        %v1425 = vlaneseq
        %v1426 = vshrl.u32 %v1425, 7
        %v1427 = vsub.s32 0, %v1426
        %v1428 = vrot.slane %v1423, %v1427
        %v1430 = vadd.f32 %v1422, %v1428
        %v1431 = vadd.f32 %v1430, %v364
        %v1432 = vsel %vm377, %v1431, 0.0
        %1433 = vadd.xlane.f32.xlu0 %v1432
        %v1434 = vpop.xlane.xlu0 %1433
        %v1435 = vrcp.pop 32.0
        %v1436 = vmul.f32 %v1434, %v1435
        %v1437 = vsub.f32 %v1431, %v1436
        %v1438 = vmul.f32 %v1437, %v1437
        %v1439 = vsel %vm377, %v1438, 0.0
        %1440 = vadd.xlane.f32.xlu0 %v1439
        %v1441 = vpop.xlane.xlu0 %1440
        %v1442 = vmul.f32 %v1441, %v1435
        %v1443 = vadd.f32 %v1442, 1e-12
        %v1444 = vrsqrt.pop %v1443
        %v1445 = vmul.f32 %v1437, %v1444
        %v1446 = vld [vmem:[%s6] sm:$0x1]
        %v1448 = vlaneseq
        %v1449 = vshrl.u32 %v1448, 7
        %v1450 = vsub.s32 0, %v1449
        %v1451 = vrot.slane %v1446, %v1450
        %v1453 = vmul.f32 %v1445, %v1451
        %v1454 = vld [vmem:[%s7] sm:$0x1]
        %v1456 = vlaneseq
        %v1457 = vshrl.u32 %v1456, 7
        %v1458 = vsub.s32 0, %v1457
        %v1459 = vrot.slane %v1454, %v1458
        %v1461 = vadd.f32 %v1453, %v1459
        %1462 = vst.msk [vmem:[%s360] sm:$0xff] %vm377, %v1461
        %s1463 = sand.u32 %s212, 1
        %s1464 = scalar_lea.sflag [#allocation4], %s1463
        %s1465 = sand.u32 %s212, 1
        %s1466 = smul.addr %s1465, 8
        %s1467 = scalar_lea.vmem [#allocation8], %s1466
        // Predicated region
        $region65: #{tpu_custom_call.1} parent=51 // pred_check
          %p1468 = pneg %p222
        $region66: #{tpu_custom_call.1} parent=51 // pred_check_branch
          %1470 = sbr.rel (%p1468) target = $region68
        $region67: #{tpu_custom_call.1} parent=51 // pred_region
          %s1472 = ssub.s32 128, 128
          %1473 = vsyncadd %s1464, %s1472
          %s1474 = smul.addr %s26, 128
          %s1475 = scalar_lea.hbm %s8, %s1474
          %s1477 = sshll.u32 %s1467, 4
          %s1478 = int_to_ptr.vmem [resolvable:$true] %s1477
          %1480 = dma.vmem_to_hbm [thread:$0]  %s1478, 128, %s1475, %s1464
        $region68: #{tpu_custom_call.1} parent=51 // pred_fallthru
          _
      $region52: #{tpu_custom_call.1} parent=5 // pred_fallthru
        _
      %p1481 = scmp.le.s32.totalorder 2, %s21
      // Predicated region
      $region69: #{tpu_custom_call.1} parent=5 // pred_check
        %p1482 = pneg %p1481
      $region70: #{tpu_custom_call.1} parent=5 // pred_check_branch
        %1484 = sbr.rel (%p1482) target = $region72
      $region71: #{tpu_custom_call.1} parent=5 // pred_region
        %s1485 = ssub.s32 %s21, 2
        // Predicated region
        $region73: #{tpu_custom_call.1} parent=71 // pred_check
          %p1486 = pneg %p228
        $region74: #{tpu_custom_call.1} parent=71 // pred_check_branch
          %1488 = sbr.rel (%p1486) target = $region76
        $region75: #{tpu_custom_call.1} parent=71 // pred_region
          %s1489 = sand.u32 %s213, 1
          %s1490 = scalar_lea.sflag [#allocation4], %s1489
          %s1491 = sand.u32 %s213, 1
          %s1492 = smul.addr %s1491, 8
          %s1493 = scalar_lea.vmem [#allocation8], %s1492
          %1494 = dma.done %s1490, 128
        $region76: #{tpu_custom_call.1} parent=71 // pred_fallthru
          _
      $region72: #{tpu_custom_call.1} parent=5 // pred_fallthru
        _
    $region6: #{tpu_custom_call.1} parent=1 // loop_footer
      %s25 = sadd.s32 1, %s21
    $region7: #{tpu_custom_call.1} parent=1 // loop_footer_branch
      %20 = sbr.rel target = $region3
    $region8: #{tpu_custom_call.1} parent=1 // loop_exit
      _
    %1495 = vsyncpa [#allocation3], 1
    %s1496 = scalar_lea.sflag [#allocation3], 1
    %1497 = vsyncpa %s1496, 1
    %1498 = vsyncpa [#allocation6], 1
    %1499 = vsyncpa [#allocation4], 1
    %s1500 = scalar_lea.sflag [#allocation4], 1
    %1501 = vsyncpa %s1500, 1

</llo_original>
